<compile_context>
chip_gen: v7x
topology: tpu7x:2x2x1
jax: 0.10.0
libtpu: 0.0.40
codegen_flags: <defaults>
</compile_context>

<pallas_src>
import math

import jax
import jax.numpy as jnp
from jax import lax
from jax.experimental import pallas as pl
from jax.experimental.pallas import tpu as pltpu

# ------------------------- problem sizes -------------------------
D    = 32          # inputDim (and LSTM hidden size)
S    = 8           # sequence length
B    = 2           # batch
BS   = B * S
V    = 16          # vocab size
NCLS = 2           # nbClasse
HID  = 10          # classifier hidden width
L    = 3           # number of AttentionBlockTP10 blocks
PAD_ID = 0         # word2id['__PAD__']
NEG  = -1e30       # finite "minus infinity" for the mask

# ---------------- packed-slab row layout ----------------
# bf16 weight slab (W_ROWS, 128): all MXU weight operands.
ROW_WIH  = 0                 # (D, 4D)   LSTM W_ih, gate order [i, f, o, g]
ROW_WHH  = ROW_WIH + D       # (D, 4D)   LSTM W_hh
ROW_WQKV = ROW_WHH + D       # L * (D, 128): [Wq | Wk | Wv | 0]
ROW_WM   = ROW_WQKV + L * D  # L * (D, 128): block MLP weight in lanes 0..D
W_ROWS   = ROW_WM + L * D    # 256

# f32 slab (F_ROWS, 128): biases, layernorm params, embeddings, classifier.
ROW_BLSTM = 0                # (1, 4D)  b_ih + b_hh, gate order [i, f, o, g]
ROW_BQKV  = 1                # L rows, (1, 128): [bq | bk | bv | 0]
ROW_BM    = ROW_BQKV + L     # L rows, lanes 0..D
ROW_GAM   = ROW_BM + L       # L rows
ROW_BET   = ROW_GAM + L      # L rows
ROW_B1    = ROW_BET + L      # 1 row, lanes 0..HID
ROW_B2    = ROW_B1 + 1       # 1 row, lanes 0..NCLS
ROW_EMB   = 16               # V rows, lanes 0..D
ROW_W1    = ROW_EMB + V      # D rows, lanes 0..HID (rest zero)
ROW_W2    = ROW_W1 + D       # D rows (rows >= HID zero), lanes 0..NCLS
F_ROWS    = ROW_W2 + D       # 96


# ======================= fused Pallas kernel =======================

def fused_kernel(ids_col_ref, ids_row_ref, wslab_ref, fslab_ref, out_ref):
    f32, bf16 = jnp.float32, jnp.bfloat16

    ids_col = ids_col_ref[...]                                   # (BS, 1) int32, time-major
    ids_row = ids_row_ref[...]                                   # (1, BS) int32, time-major

    # ---- embedding gather as a one-hot matmul (table resident in VMEM, f32 exact) ----
    emb_tab = fslab_ref[ROW_EMB:ROW_EMB + V, 0:D]                # (V, D)
    onehot = (lax.broadcasted_iota(jnp.int32, (BS, V), 1) == ids_col).astype(f32)
    emb = jnp.dot(onehot, emb_tab, preferred_element_type=f32)   # (BS, D)

    # ---- block-diagonal batch mask + key-padding mask, built once ----
    row_b = lax.broadcasted_iota(jnp.int32, (BS, 1), 0) % B      # batch of query row
    col_b = lax.broadcasted_iota(jnp.int32, (1, BS), 1) % B      # batch of key column
    valid = (row_b == col_b) & (ids_row != PAD_ID)
    mask = jnp.where(valid, 0.0, NEG).astype(f32)                # (BS, BS)

    # ---------------- Contextualiser: single-layer LSTM ----------------
    w_ih   = wslab_ref[ROW_WIH:ROW_WIH + D, :]                   # (D, 4D) bf16
    w_hh   = wslab_ref[ROW_WHH:ROW_WHH + D, :]                   # (D, 4D) bf16
    b_lstm = fslab_ref[ROW_BLSTM:ROW_BLSTM + 1, :]               # (1, 4D) f32

    # input projection hoisted out of the recurrence (one lane-dense matmul)
    xg = jnp.dot(emb.astype(bf16), w_ih, preferred_element_type=f32) + b_lstm  # (BS, 4D)

    lane = lax.broadcasted_iota(jnp.int32, (B, 4 * D), 1)
    is_sig = lane < 3 * D                                        # [i|f|o] sigmoid, [g] tanh

    h = jnp.zeros((B, D), f32)
    c = jnp.zeros((B, D), f32)
    hs = []
    for t in range(S):                                           # short serial chain, unrolled
        g = xg[t * B:(t + 1) * B, :] + jnp.dot(h.astype(bf16), w_hh,
                                               preferred_element_type=f32)
        act = jnp.where(is_sig, jax.nn.sigmoid(g), jnp.tanh(g))  # 2 EUP pushes total
        i_g = act[:, 0 * D:1 * D]
        f_g = act[:, 1 * D:2 * D]
        o_g = act[:, 2 * D:3 * D]
        g_g = act[:, 3 * D:4 * D]
        c = f_g * c + i_g * g_g
        h = o_g * jnp.tanh(c)
        hs.append(h)
    ctx = jnp.concatenate(hs, axis=0)                            # (BS, D), time-major rows

    inv_sqrt_d = jnp.float32(1.0 / math.sqrt(D))

    # ---------------- L attention blocks (unrolled, de-batched) ----------------
    for l in range(L):
        wqkv = wslab_ref[ROW_WQKV + l * D:ROW_WQKV + (l + 1) * D, :]   # (D, 128) bf16
        bqkv = fslab_ref[ROW_BQKV + l:ROW_BQKV + l + 1, :]             # (1, 128) f32
        qkv = jnp.dot(ctx.astype(bf16), wqkv, preferred_element_type=f32) + bqkv
        qkv_bf = qkv.astype(bf16)
        q = qkv_bf[:, 0 * D:1 * D]
        k = qkv_bf[:, 1 * D:2 * D]
        v = qkv_bf[:, 2 * D:3 * D]

        logits = lax.dot_general(q, k, (((1,), (1,)), ((), ())),
                                 preferred_element_type=f32) * inv_sqrt_d
        logits = logits + mask                                   # (BS, BS)
        m = jnp.max(logits, axis=-1, keepdims=True)
        p = jnp.exp(logits - m)
        probas = p * pl.reciprocal(jnp.sum(p, axis=-1, keepdims=True), approx=True)
        y = jnp.dot(probas.astype(bf16), v, preferred_element_type=f32)  # (BS, D)

        wm  = wslab_ref[ROW_WM + l * D:ROW_WM + (l + 1) * D, 0:D]        # (D, D) bf16
        bm  = fslab_ref[ROW_BM + l:ROW_BM + l + 1, 0:D]
        gam = fslab_ref[ROW_GAM + l:ROW_GAM + l + 1, 0:D]
        bet = fslab_ref[ROW_BET + l:ROW_BET + l + 1, 0:D]

        o = jnp.dot((ctx + y).astype(bf16), wm, preferred_element_type=f32) + bm
        mu = jnp.mean(o, axis=-1, keepdims=True)                 # LayerNorm (f32)
        var = jnp.mean((o - mu) ** 2, axis=-1, keepdims=True)
        ctx = (o - mu) * lax.rsqrt(var + 1e-5) * gam + bet       # (BS, D)

    # ---------------- mean pooling over time + classifier (f32) ----------------
    avg = jnp.mean(ctx.reshape(S, B, D), axis=0)                 # (B, D)
    w1p = fslab_ref[ROW_W1:ROW_W1 + D, 0:D]                      # zero-padded beyond HID
    b1p = fslab_ref[ROW_B1:ROW_B1 + 1, 0:D]
    w2p = fslab_ref[ROW_W2:ROW_W2 + D, 0:D]                      # zero rows >= HID
    b2p = fslab_ref[ROW_B2:ROW_B2 + 1, 0:D]
    h1 = jnp.maximum(jnp.dot(avg, w1p, preferred_element_type=f32) + b1p, 0.0)
    logits_out = jnp.dot(h1, w2p, preferred_element_type=f32) + b2p      # (B, 32)
    out_ref[...] = logits_out[:, :NCLS]


def _full_spec(shape):
    nd = len(shape)
    return pl.BlockSpec(shape, lambda i, _nd=nd: (0,) * _nd)


@jax.jit
def transformer_forward(x_ids, wslab, fslab):
    # the only wrapper-side ops are two trivial views of the token ids (time-major)
    ids_col = x_ids.T.reshape(BS, 1).astype(jnp.int32)
    ids_row = x_ids.T.reshape(1, BS).astype(jnp.int32)
    return pl.pallas_call(
        fused_kernel,
        out_shape=jax.ShapeDtypeStruct((B, NCLS), jnp.float32),
        grid=(1,),
        in_specs=[
            _full_spec((BS, 1)),           # token ids, column view
            _full_spec((1, BS)),           # token ids, row view
            _full_spec((W_ROWS, 128)),     # bf16 weight slab
            _full_spec((F_ROWS, 128)),     # f32 bias / embeddings / classifier slab
        ],
        out_specs=_full_spec((B, NCLS)),
        compiler_params=pltpu.CompilerParams(dimension_semantics=("arbitrary",)),
    )(ids_col, ids_row, wslab, fslab)


# ======================= parameter init + host-side packing =======================

def init_params(key):
    keys = iter(jax.random.split(key, 16))

    def uni(shape, bound):
        return jax.random.uniform(next(keys), shape, jnp.float32, -bound, bound)

    bd = 1.0 / math.sqrt(D)
    bh = 1.0 / math.sqrt(HID)

    p = {}
    p['embeddings'] = jax.random.normal(next(keys), (V, D), jnp.float32) * 0.5
    # LSTM, canonical PyTorch gate order [i, f, g, o]; weights stored (in, out)
    p['w_ih'] = uni((D, 4 * D), bd)
    p['w_hh'] = uni((D, 4 * D), bd)
    p['b_lstm'] = uni((1, 4 * D), bd) + uni((1, 4 * D), bd)       # b_ih + b_hh
    # Attention blocks (packed [Wq|Wk|Wv] per block), MLP, LayerNorm
    p['wqkv'] = uni((L, D, 3 * D), bd)
    p['bqkv'] = uni((L, 1, 3 * D), bd)
    p['wm'] = uni((L, D, D), bd)
    p['bm'] = uni((L, 1, D), bd)
    p['gamma'] = jnp.ones((L, 1, D), jnp.float32)
    p['beta'] = jnp.zeros((L, 1, D), jnp.float32)
    # classifier
    p['w1'] = uni((D, HID), bd)
    p['b1'] = uni((1, HID), bd)
    p['w2'] = uni((HID, NCLS), bh)
    p['b2'] = uni((1, NCLS), bh)
    return p


def pack_params(p):
    """Pack all parameters into one bf16 weight slab and one f32 slab (lane-dense)."""
    def reorder_gates(w):        # columns [i, f, g, o] -> [i, f, o, g]
        i, f, g, o = jnp.split(w, 4, axis=-1)
        return jnp.concatenate([i, f, o, g], axis=-1)

    wslab = jnp.zeros((W_ROWS, 128), jnp.float32)
    wslab = wslab.at[ROW_WIH:ROW_WIH + D, :].set(reorder_gates(p['w_ih']))
    wslab = wslab.at[ROW_WHH:ROW_WHH + D, :].set(reorder_gates(p['w_hh']))
    for l in range(L):
        wslab = wslab.at[ROW_WQKV + l * D:ROW_WQKV + (l + 1) * D, :3 * D].set(p['wqkv'][l])
        wslab = wslab.at[ROW_WM + l * D:ROW_WM + (l + 1) * D, :D].set(p['wm'][l])
    wslab = wslab.astype(jnp.bfloat16)

    fslab = jnp.zeros((F_ROWS, 128), jnp.float32)
    fslab = fslab.at[ROW_BLSTM, :].set(reorder_gates(p['b_lstm'])[0])
    for l in range(L):
        fslab = fslab.at[ROW_BQKV + l, :3 * D].set(p['bqkv'][l, 0])
        fslab = fslab.at[ROW_BM + l, :D].set(p['bm'][l, 0])
        fslab = fslab.at[ROW_GAM + l, :D].set(p['gamma'][l, 0])
        fslab = fslab.at[ROW_BET + l, :D].set(p['beta'][l, 0])
    fslab = fslab.at[ROW_B1, :HID].set(p['b1'][0])
    fslab = fslab.at[ROW_B2, :NCLS].set(p['b2'][0])
    fslab = fslab.at[ROW_EMB:ROW_EMB + V, :D].set(p['embeddings'])
    fslab = fslab.at[ROW_W1:ROW_W1 + D, :HID].set(p['w1'])
    fslab = fslab.at[ROW_W2:ROW_W2 + HID, :NCLS].set(p['w2'])
    return wslab, fslab


# ======================= pure-JAX f32 reference (PyTorch-faithful) =======================

def reference_forward(x_ids, p):
    emb = p['embeddings'][x_ids]                                   # (B, S, D)

    def step(carry, x_t):
        h, c = carry
        gates = x_t @ p['w_ih'] + h @ p['w_hh'] + p['b_lstm'][0]   # gate order [i, f, g, o]
        i = jax.nn.sigmoid(gates[:, :D])
        f = jax.nn.sigmoid(gates[:, D:2 * D])
        g = jnp.tanh(gates[:, 2 * D:3 * D])
        o = jax.nn.sigmoid(gates[:, 3 * D:])
        c = f * c + i * g
        h = o * jnp.tanh(c)
        return (h, c), h

    _, hs = lax.scan(step, (jnp.zeros((B, D)), jnp.zeros((B, D))),
                     jnp.transpose(emb, (1, 0, 2)))
    out = jnp.transpose(hs, (1, 0, 2))                             # (B, S, D)

    # key-padding mask: mask[b, i, j] = -inf if x[b, j] == PAD
    mask = jnp.where(x_ids == PAD_ID, -jnp.inf, 0.0).astype(jnp.float32)[:, None, :]

    for l in range(L):
        wqkv, bqkv = p['wqkv'][l], p['bqkv'][l][0]
        q = out @ wqkv[:, :D] + bqkv[:D]
        k = out @ wqkv[:, D:2 * D] + bqkv[D:2 * D]
        v = out @ wqkv[:, 2 * D:] + bqkv[2 * D:]
        logits = jnp.einsum('bqd,bkd->bqk', q, k) / jnp.sqrt(jnp.float32(D)) + mask
        probas = jax.nn.softmax(logits, axis=2)
        y = jnp.einsum('bqk,bkd->bqd', probas, v)
        o = (out + y) @ p['wm'][l] + p['bm'][l]
        mu = o.mean(-1, keepdims=True)
        var = ((o - mu) ** 2).mean(-1, keepdims=True)
        out = (o - mu) / jnp.sqrt(var + 1e-5) * p['gamma'][l] + p['beta'][l]

    avg = out.mean(axis=1)                                         # (B, D)
    h = jnp.maximum(avg @ p['w1'] + p['b1'], 0.0)
    return h @ p['w2'] + p['b2']


# ======================= main =======================

if __name__ == "__main__":
    key = jax.random.PRNGKey(0)
    k_param, k_ids = jax.random.split(key)
    params = init_params(k_param)
    wslab, fslab = pack_params(params)

    # token ids in [1, V); one PAD token to exercise the key-padding mask
    x_ids = jax.random.randint(k_ids, (B, S), 1, V, dtype=jnp.int32)
    x_ids = x_ids.at[0, S - 1].set(PAD_ID)

    y = transformer_forward(x_ids, wslab, fslab)
    y = jax.block_until_ready(y)

    y_ref = reference_forward(x_ids, params)
    max_diff = float(jnp.max(jnp.abs(y - y_ref)))
    assert y.shape == (B, NCLS), y.shape
    assert bool(jnp.all(jnp.isfinite(y))), "non-finite output"
    assert max_diff < 5e-2, f"mismatch vs f32 reference (bf16 MXU operands): {max_diff}"

    print("KERNEL_OK")
</pallas_src>

<mosaic_0001>
module attributes {stable_mosaic.version = 11 : i64} {
  func.func @fused_kernel(%arg0: i32, %arg1: memref<16x1xi32, #tpu.memory_space<vmem>>, %arg2: memref<1x16xi32, #tpu.memory_space<vmem>>, %arg3: memref<256x128xbf16, #tpu.memory_space<vmem>>, %arg4: memref<96x128xf32, #tpu.memory_space<vmem>>, %arg5: memref<2x2xf32, #tpu.memory_space<vmem>>) attributes {dimension_semantics = [#tpu.dimension_semantics<arbitrary>], iteration_bounds = array<i64: 1>, scalar_prefetch = 0 : i64, scratch_operands = 0 : i64, tpu.core_type = #tpu.core_type<tc>, window_params = [{pipeline_mode = #tpu.pipeline_mode<synchronous>, transform_indices = @transform_0, window_bounds = array<i64: 16, 1>}, {pipeline_mode = #tpu.pipeline_mode<synchronous>, transform_indices = @transform_1, window_bounds = array<i64: 1, 16>}, {pipeline_mode = #tpu.pipeline_mode<synchronous>, transform_indices = @transform_2, window_bounds = array<i64: 256, 128>}, {pipeline_mode = #tpu.pipeline_mode<synchronous>, transform_indices = @transform_3, window_bounds = array<i64: 96, 128>}, {pipeline_mode = #tpu.pipeline_mode<synchronous>, transform_indices = @transform_4, window_bounds = array<i64: 2, 2>}]} {
    %c0 = arith.constant 0 : index
    %c0_0 = arith.constant 0 : index
    %0 = vector.load %arg1[%c0, %c0_0] : memref<16x1xi32, #tpu.memory_space<vmem>>, vector<16x1xi32>
    %c0_1 = arith.constant 0 : index
    %c0_2 = arith.constant 0 : index
    %1 = vector.load %arg2[%c0_1, %c0_2] : memref<1x16xi32, #tpu.memory_space<vmem>>, vector<1x16xi32>
    %c16 = arith.constant 16 : index
    %c0_3 = arith.constant 0 : index
    %2 = vector.load %arg4[%c16, %c0_3] : memref<96x128xf32, #tpu.memory_space<vmem>>, vector<16x32xf32>
    %3 = tpu.iota {dimensions = array<i32: 1>} : vector<16x16xi32>
    %4 = vector.broadcast %0 : vector<16x1xi32> to vector<16x16xi32>
    %5 = arith.cmpi eq, %3, %4 : vector<16x16xi32>
    %6 = arith.extui %5 : vector<16x16xi1> to vector<16x16xi32>
    %7 = arith.sitofp %6 : vector<16x16xi32> to vector<16x16xf32>
    %cst = arith.constant dense<0.000000e+00> : vector<16x32xf32>
    %8 = tpu.matmul %7, %2, %cst {dimension_numbers = #tpu.dot_dimension_numbers<[1], [0], [0], [1], [0, 0, 1, 1], [], []>} : vector<16x16xf32>, vector<16x32xf32>, vector<16x32xf32> -> vector<16x32xf32>
    %9 = tpu.iota {dimensions = array<i32: 0>} : vector<16x1xi32>
    %c2_i32 = arith.constant 2 : i32
    %c0_i32 = arith.constant 0 : i32
    %10 = arith.cmpi eq, %c2_i32, %c0_i32 : i32
    %c1_i32 = arith.constant 1 : i32
    %11 = arith.select %10, %c1_i32, %c2_i32 : i32
    %12 = vector.broadcast %11 : i32 to vector<16x1xi32>
    %13 = arith.remsi %9, %12 : vector<16x1xi32>
    %c0_i32_4 = arith.constant 0 : i32
    %14 = vector.broadcast %c0_i32_4 : i32 to vector<16x1xi32>
    %15 = arith.cmpi ne, %13, %14 : vector<16x1xi32>
    %c0_i32_5 = arith.constant 0 : i32
    %16 = vector.broadcast %c0_i32_5 : i32 to vector<16x1xi32>
    %17 = arith.cmpi slt, %13, %16 : vector<16x1xi32>
    %c0_i32_6 = arith.constant 0 : i32
    %18 = arith.cmpi slt, %11, %c0_i32_6 : i32
    %19 = vector.broadcast %18 : i1 to vector<16x1xi1>
    %20 = vector.broadcast %19 : vector<16x1xi1> to vector<16x1xi1>
    %21 = arith.xori %17, %20 : vector<16x1xi1>
    %22 = arith.andi %21, %15 : vector<16x1xi1>
    %23 = vector.broadcast %11 : i32 to vector<16x1xi32>
    %24 = arith.addi %13, %23 : vector<16x1xi32>
    %25 = arith.select %22, %24, %13 : vector<16x1xi1>, vector<16x1xi32>
    %26 = tpu.iota {dimensions = array<i32: 1>} : vector<1x16xi32>
    %c2_i32_7 = arith.constant 2 : i32
    %c0_i32_8 = arith.constant 0 : i32
    %27 = arith.cmpi eq, %c2_i32_7, %c0_i32_8 : i32
    %c1_i32_9 = arith.constant 1 : i32
    %28 = arith.select %27, %c1_i32_9, %c2_i32_7 : i32
    %29 = vector.broadcast %28 : i32 to vector<1x16xi32>
    %30 = arith.remsi %26, %29 : vector<1x16xi32>
    %c0_i32_10 = arith.constant 0 : i32
    %31 = vector.broadcast %c0_i32_10 : i32 to vector<1x16xi32>
    %32 = arith.cmpi ne, %30, %31 : vector<1x16xi32>
    %c0_i32_11 = arith.constant 0 : i32
    %33 = vector.broadcast %c0_i32_11 : i32 to vector<1x16xi32>
    %34 = arith.cmpi slt, %30, %33 : vector<1x16xi32>
    %c0_i32_12 = arith.constant 0 : i32
    %35 = arith.cmpi slt, %28, %c0_i32_12 : i32
    %36 = vector.broadcast %35 : i1 to vector<1x16xi1>
    %37 = vector.broadcast %36 : vector<1x16xi1> to vector<1x16xi1>
    %38 = arith.xori %34, %37 : vector<1x16xi1>
    %39 = arith.andi %38, %32 : vector<1x16xi1>
    %40 = vector.broadcast %28 : i32 to vector<1x16xi32>
    %41 = arith.addi %30, %40 : vector<1x16xi32>
    %42 = arith.select %39, %41, %30 : vector<1x16xi1>, vector<1x16xi32>
    %43 = vector.broadcast %25 : vector<16x1xi32> to vector<16x16xi32>
    %44 = vector.broadcast %42 : vector<1x16xi32> to vector<16x16xi32>
    %45 = arith.cmpi eq, %43, %44 : vector<16x16xi32>
    %c0_i32_13 = arith.constant 0 : i32
    %46 = vector.broadcast %c0_i32_13 : i32 to vector<1x16xi32>
    %47 = arith.cmpi ne, %1, %46 : vector<1x16xi32>
    %48 = vector.broadcast %47 : vector<1x16xi1> to vector<16x16xi1>
    %49 = arith.andi %45, %48 : vector<16x16xi1>
    %cst_14 = arith.constant 0.000000e+00 : f32
    %cst_15 = arith.constant -1.000000e+30 : f32
    %50 = vector.broadcast %cst_14 : f32 to vector<16x16xf32>
    %51 = vector.broadcast %cst_15 : f32 to vector<16x16xf32>
    %52 = arith.select %49, %50, %51 : vector<16x16xi1>, vector<16x16xf32>
    %c0_16 = arith.constant 0 : index
    %c0_17 = arith.constant 0 : index
    %53 = vector.load %arg3[%c0_16, %c0_17] : memref<256x128xbf16, #tpu.memory_space<vmem>>, vector<32x128xbf16>
    %c32 = arith.constant 32 : index
    %c0_18 = arith.constant 0 : index
    %54 = vector.load %arg3[%c32, %c0_18] : memref<256x128xbf16, #tpu.memory_space<vmem>>, vector<32x128xbf16>
    %c0_19 = arith.constant 0 : index
    %c0_20 = arith.constant 0 : index
    %55 = vector.load %arg4[%c0_19, %c0_20] : memref<96x128xf32, #tpu.memory_space<vmem>>, vector<1x128xf32>
    %56 = arith.truncf %8 : vector<16x32xf32> to vector<16x32xbf16>
    %cst_21 = arith.constant dense<0.000000e+00> : vector<16x128xf32>
    %57 = tpu.matmul %56, %53, %cst_21 {dimension_numbers = #tpu.dot_dimension_numbers<[1], [0], [0], [1], [0, 0, 1, 1], [], []>} : vector<16x32xbf16>, vector<32x128xbf16>, vector<16x128xf32> -> vector<16x128xf32>
    %58 = vector.broadcast %55 : vector<1x128xf32> to vector<16x128xf32>
    %59 = arith.addf %57, %58 : vector<16x128xf32>
    %60 = tpu.iota {dimensions = array<i32: 1>} : vector<2x128xi32>
    %c96_i32 = arith.constant 96 : i32
    %61 = vector.broadcast %c96_i32 : i32 to vector<2x128xi32>
    %62 = arith.cmpi slt, %60, %61 : vector<2x128xi32>
    %cst_22 = arith.constant 0.000000e+00 : f32
    %63 = vector.broadcast %cst_22 : f32 to vector<2x32xf32>
    %cst_23 = arith.constant 0.000000e+00 : f32
    %64 = vector.broadcast %cst_23 : f32 to vector<2x32xf32>
    %65 = vector.extract_strided_slice %59 {offsets = [0, 0], sizes = [2, 128], strides = [1, 1]} : vector<16x128xf32> to vector<2x128xf32>
    %66 = arith.truncf %63 : vector<2x32xf32> to vector<2x32xbf16>
    %cst_24 = arith.constant dense<0.000000e+00> : vector<2x128xf32>
    %67 = tpu.matmul %66, %54, %cst_24 {dimension_numbers = #tpu.dot_dimension_numbers<[1], [0], [0], [1], [0, 0, 1, 1], [], []>} : vector<2x32xbf16>, vector<32x128xbf16>, vector<2x128xf32> -> vector<2x128xf32>
    %68 = arith.addf %65, %67 : vector<2x128xf32>
    %69 = arith.negf %68 : vector<2x128xf32>
    %70 = math.exp %69 : vector<2x128xf32>
    %cst_25 = arith.constant 1.000000e+00 : f32
    %71 = vector.broadcast %cst_25 : f32 to vector<2x128xf32>
    %72 = arith.addf %71, %70 : vector<2x128xf32>
    %73 = arith.divf %71, %72 : vector<2x128xf32>
    %74 = math.tanh %68 : vector<2x128xf32>
    %75 = arith.select %62, %73, %74 : vector<2x128xi1>, vector<2x128xf32>
    %76 = vector.extract_strided_slice %75 {offsets = [0, 0], sizes = [2, 32], strides = [1, 1]} : vector<2x128xf32> to vector<2x32xf32>
    %77 = vector.extract_strided_slice %75 {offsets = [0, 32], sizes = [2, 32], strides = [1, 1]} : vector<2x128xf32> to vector<2x32xf32>
    %78 = vector.extract_strided_slice %75 {offsets = [0, 64], sizes = [2, 32], strides = [1, 1]} : vector<2x128xf32> to vector<2x32xf32>
    %79 = vector.extract_strided_slice %75 {offsets = [0, 96], sizes = [2, 32], strides = [1, 1]} : vector<2x128xf32> to vector<2x32xf32>
    %80 = arith.mulf %77, %64 : vector<2x32xf32>
    %81 = arith.mulf %76, %79 : vector<2x32xf32>
    %82 = arith.addf %80, %81 : vector<2x32xf32>
    %83 = math.tanh %82 : vector<2x32xf32>
    %84 = arith.mulf %78, %83 : vector<2x32xf32>
    %85 = vector.extract_strided_slice %59 {offsets = [2, 0], sizes = [2, 128], strides = [1, 1]} : vector<16x128xf32> to vector<2x128xf32>
    %86 = arith.truncf %84 : vector<2x32xf32> to vector<2x32xbf16>
    %cst_26 = arith.constant dense<0.000000e+00> : vector<2x128xf32>
    %87 = tpu.matmul %86, %54, %cst_26 {dimension_numbers = #tpu.dot_dimension_numbers<[1], [0], [0], [1], [0, 0, 1, 1], [], []>} : vector<2x32xbf16>, vector<32x128xbf16>, vector<2x128xf32> -> vector<2x128xf32>
    %88 = arith.addf %85, %87 : vector<2x128xf32>
    %89 = arith.negf %88 : vector<2x128xf32>
    %90 = math.exp %89 : vector<2x128xf32>
    %cst_27 = arith.constant 1.000000e+00 : f32
    %91 = vector.broadcast %cst_27 : f32 to vector<2x128xf32>
    %92 = arith.addf %91, %90 : vector<2x128xf32>
    %93 = arith.divf %91, %92 : vector<2x128xf32>
    %94 = math.tanh %88 : vector<2x128xf32>
    %95 = arith.select %62, %93, %94 : vector<2x128xi1>, vector<2x128xf32>
    %96 = vector.extract_strided_slice %95 {offsets = [0, 0], sizes = [2, 32], strides = [1, 1]} : vector<2x128xf32> to vector<2x32xf32>
    %97 = vector.extract_strided_slice %95 {offsets = [0, 32], sizes = [2, 32], strides = [1, 1]} : vector<2x128xf32> to vector<2x32xf32>
    %98 = vector.extract_strided_slice %95 {offsets = [0, 64], sizes = [2, 32], strides = [1, 1]} : vector<2x128xf32> to vector<2x32xf32>
    %99 = vector.extract_strided_slice %95 {offsets = [0, 96], sizes = [2, 32], strides = [1, 1]} : vector<2x128xf32> to vector<2x32xf32>
    %100 = arith.mulf %97, %82 : vector<2x32xf32>
    %101 = arith.mulf %96, %99 : vector<2x32xf32>
    %102 = arith.addf %100, %101 : vector<2x32xf32>
    %103 = math.tanh %102 : vector<2x32xf32>
    %104 = arith.mulf %98, %103 : vector<2x32xf32>
    %105 = vector.extract_strided_slice %59 {offsets = [4, 0], sizes = [2, 128], strides = [1, 1]} : vector<16x128xf32> to vector<2x128xf32>
    %106 = arith.truncf %104 : vector<2x32xf32> to vector<2x32xbf16>
    %cst_28 = arith.constant dense<0.000000e+00> : vector<2x128xf32>
    %107 = tpu.matmul %106, %54, %cst_28 {dimension_numbers = #tpu.dot_dimension_numbers<[1], [0], [0], [1], [0, 0, 1, 1], [], []>} : vector<2x32xbf16>, vector<32x128xbf16>, vector<2x128xf32> -> vector<2x128xf32>
    %108 = arith.addf %105, %107 : vector<2x128xf32>
    %109 = arith.negf %108 : vector<2x128xf32>
    %110 = math.exp %109 : vector<2x128xf32>
    %cst_29 = arith.constant 1.000000e+00 : f32
    %111 = vector.broadcast %cst_29 : f32 to vector<2x128xf32>
    %112 = arith.addf %111, %110 : vector<2x128xf32>
    %113 = arith.divf %111, %112 : vector<2x128xf32>
    %114 = math.tanh %108 : vector<2x128xf32>
    %115 = arith.select %62, %113, %114 : vector<2x128xi1>, vector<2x128xf32>
    %116 = vector.extract_strided_slice %115 {offsets = [0, 0], sizes = [2, 32], strides = [1, 1]} : vector<2x128xf32> to vector<2x32xf32>
    %117 = vector.extract_strided_slice %115 {offsets = [0, 32], sizes = [2, 32], strides = [1, 1]} : vector<2x128xf32> to vector<2x32xf32>
    %118 = vector.extract_strided_slice %115 {offsets = [0, 64], sizes = [2, 32], strides = [1, 1]} : vector<2x128xf32> to vector<2x32xf32>
    %119 = vector.extract_strided_slice %115 {offsets = [0, 96], sizes = [2, 32], strides = [1, 1]} : vector<2x128xf32> to vector<2x32xf32>
    %120 = arith.mulf %117, %102 : vector<2x32xf32>
    %121 = arith.mulf %116, %119 : vector<2x32xf32>
    %122 = arith.addf %120, %121 : vector<2x32xf32>
    %123 = math.tanh %122 : vector<2x32xf32>
    %124 = arith.mulf %118, %123 : vector<2x32xf32>
    %125 = vector.extract_strided_slice %59 {offsets = [6, 0], sizes = [2, 128], strides = [1, 1]} : vector<16x128xf32> to vector<2x128xf32>
    %126 = arith.truncf %124 : vector<2x32xf32> to vector<2x32xbf16>
    %cst_30 = arith.constant dense<0.000000e+00> : vector<2x128xf32>
    %127 = tpu.matmul %126, %54, %cst_30 {dimension_numbers = #tpu.dot_dimension_numbers<[1], [0], [0], [1], [0, 0, 1, 1], [], []>} : vector<2x32xbf16>, vector<32x128xbf16>, vector<2x128xf32> -> vector<2x128xf32>
    %128 = arith.addf %125, %127 : vector<2x128xf32>
    %129 = arith.negf %128 : vector<2x128xf32>
    %130 = math.exp %129 : vector<2x128xf32>
    %cst_31 = arith.constant 1.000000e+00 : f32
    %131 = vector.broadcast %cst_31 : f32 to vector<2x128xf32>
    %132 = arith.addf %131, %130 : vector<2x128xf32>
    %133 = arith.divf %131, %132 : vector<2x128xf32>
    %134 = math.tanh %128 : vector<2x128xf32>
    %135 = arith.select %62, %133, %134 : vector<2x128xi1>, vector<2x128xf32>
    %136 = vector.extract_strided_slice %135 {offsets = [0, 0], sizes = [2, 32], strides = [1, 1]} : vector<2x128xf32> to vector<2x32xf32>
    %137 = vector.extract_strided_slice %135 {offsets = [0, 32], sizes = [2, 32], strides = [1, 1]} : vector<2x128xf32> to vector<2x32xf32>
    %138 = vector.extract_strided_slice %135 {offsets = [0, 64], sizes = [2, 32], strides = [1, 1]} : vector<2x128xf32> to vector<2x32xf32>
    %139 = vector.extract_strided_slice %135 {offsets = [0, 96], sizes = [2, 32], strides = [1, 1]} : vector<2x128xf32> to vector<2x32xf32>
    %140 = arith.mulf %137, %122 : vector<2x32xf32>
    %141 = arith.mulf %136, %139 : vector<2x32xf32>
    %142 = arith.addf %140, %141 : vector<2x32xf32>
    %143 = math.tanh %142 : vector<2x32xf32>
    %144 = arith.mulf %138, %143 : vector<2x32xf32>
    %145 = vector.extract_strided_slice %59 {offsets = [8, 0], sizes = [2, 128], strides = [1, 1]} : vector<16x128xf32> to vector<2x128xf32>
    %146 = arith.truncf %144 : vector<2x32xf32> to vector<2x32xbf16>
    %cst_32 = arith.constant dense<0.000000e+00> : vector<2x128xf32>
    %147 = tpu.matmul %146, %54, %cst_32 {dimension_numbers = #tpu.dot_dimension_numbers<[1], [0], [0], [1], [0, 0, 1, 1], [], []>} : vector<2x32xbf16>, vector<32x128xbf16>, vector<2x128xf32> -> vector<2x128xf32>
    %148 = arith.addf %145, %147 : vector<2x128xf32>
    %149 = arith.negf %148 : vector<2x128xf32>
    %150 = math.exp %149 : vector<2x128xf32>
    %cst_33 = arith.constant 1.000000e+00 : f32
    %151 = vector.broadcast %cst_33 : f32 to vector<2x128xf32>
    %152 = arith.addf %151, %150 : vector<2x128xf32>
    %153 = arith.divf %151, %152 : vector<2x128xf32>
    %154 = math.tanh %148 : vector<2x128xf32>
    %155 = arith.select %62, %153, %154 : vector<2x128xi1>, vector<2x128xf32>
    %156 = vector.extract_strided_slice %155 {offsets = [0, 0], sizes = [2, 32], strides = [1, 1]} : vector<2x128xf32> to vector<2x32xf32>
    %157 = vector.extract_strided_slice %155 {offsets = [0, 32], sizes = [2, 32], strides = [1, 1]} : vector<2x128xf32> to vector<2x32xf32>
    %158 = vector.extract_strided_slice %155 {offsets = [0, 64], sizes = [2, 32], strides = [1, 1]} : vector<2x128xf32> to vector<2x32xf32>
    %159 = vector.extract_strided_slice %155 {offsets = [0, 96], sizes = [2, 32], strides = [1, 1]} : vector<2x128xf32> to vector<2x32xf32>
    %160 = arith.mulf %157, %142 : vector<2x32xf32>
    %161 = arith.mulf %156, %159 : vector<2x32xf32>
    %162 = arith.addf %160, %161 : vector<2x32xf32>
    %163 = math.tanh %162 : vector<2x32xf32>
    %164 = arith.mulf %158, %163 : vector<2x32xf32>
    %165 = vector.extract_strided_slice %59 {offsets = [10, 0], sizes = [2, 128], strides = [1, 1]} : vector<16x128xf32> to vector<2x128xf32>
    %166 = arith.truncf %164 : vector<2x32xf32> to vector<2x32xbf16>
    %cst_34 = arith.constant dense<0.000000e+00> : vector<2x128xf32>
    %167 = tpu.matmul %166, %54, %cst_34 {dimension_numbers = #tpu.dot_dimension_numbers<[1], [0], [0], [1], [0, 0, 1, 1], [], []>} : vector<2x32xbf16>, vector<32x128xbf16>, vector<2x128xf32> -> vector<2x128xf32>
    %168 = arith.addf %165, %167 : vector<2x128xf32>
    %169 = arith.negf %168 : vector<2x128xf32>
    %170 = math.exp %169 : vector<2x128xf32>
    %cst_35 = arith.constant 1.000000e+00 : f32
    %171 = vector.broadcast %cst_35 : f32 to vector<2x128xf32>
    %172 = arith.addf %171, %170 : vector<2x128xf32>
    %173 = arith.divf %171, %172 : vector<2x128xf32>
    %174 = math.tanh %168 : vector<2x128xf32>
    %175 = arith.select %62, %173, %174 : vector<2x128xi1>, vector<2x128xf32>
    %176 = vector.extract_strided_slice %175 {offsets = [0, 0], sizes = [2, 32], strides = [1, 1]} : vector<2x128xf32> to vector<2x32xf32>
    %177 = vector.extract_strided_slice %175 {offsets = [0, 32], sizes = [2, 32], strides = [1, 1]} : vector<2x128xf32> to vector<2x32xf32>
    %178 = vector.extract_strided_slice %175 {offsets = [0, 64], sizes = [2, 32], strides = [1, 1]} : vector<2x128xf32> to vector<2x32xf32>
    %179 = vector.extract_strided_slice %175 {offsets = [0, 96], sizes = [2, 32], strides = [1, 1]} : vector<2x128xf32> to vector<2x32xf32>
    %180 = arith.mulf %177, %162 : vector<2x32xf32>
    %181 = arith.mulf %176, %179 : vector<2x32xf32>
    %182 = arith.addf %180, %181 : vector<2x32xf32>
    %183 = math.tanh %182 : vector<2x32xf32>
    %184 = arith.mulf %178, %183 : vector<2x32xf32>
    %185 = vector.extract_strided_slice %59 {offsets = [12, 0], sizes = [2, 128], strides = [1, 1]} : vector<16x128xf32> to vector<2x128xf32>
    %186 = arith.truncf %184 : vector<2x32xf32> to vector<2x32xbf16>
    %cst_36 = arith.constant dense<0.000000e+00> : vector<2x128xf32>
    %187 = tpu.matmul %186, %54, %cst_36 {dimension_numbers = #tpu.dot_dimension_numbers<[1], [0], [0], [1], [0, 0, 1, 1], [], []>} : vector<2x32xbf16>, vector<32x128xbf16>, vector<2x128xf32> -> vector<2x128xf32>
    %188 = arith.addf %185, %187 : vector<2x128xf32>
    %189 = arith.negf %188 : vector<2x128xf32>
    %190 = math.exp %189 : vector<2x128xf32>
    %cst_37 = arith.constant 1.000000e+00 : f32
    %191 = vector.broadcast %cst_37 : f32 to vector<2x128xf32>
    %192 = arith.addf %191, %190 : vector<2x128xf32>
    %193 = arith.divf %191, %192 : vector<2x128xf32>
    %194 = math.tanh %188 : vector<2x128xf32>
    %195 = arith.select %62, %193, %194 : vector<2x128xi1>, vector<2x128xf32>
    %196 = vector.extract_strided_slice %195 {offsets = [0, 0], sizes = [2, 32], strides = [1, 1]} : vector<2x128xf32> to vector<2x32xf32>
    %197 = vector.extract_strided_slice %195 {offsets = [0, 32], sizes = [2, 32], strides = [1, 1]} : vector<2x128xf32> to vector<2x32xf32>
    %198 = vector.extract_strided_slice %195 {offsets = [0, 64], sizes = [2, 32], strides = [1, 1]} : vector<2x128xf32> to vector<2x32xf32>
    %199 = vector.extract_strided_slice %195 {offsets = [0, 96], sizes = [2, 32], strides = [1, 1]} : vector<2x128xf32> to vector<2x32xf32>
    %200 = arith.mulf %197, %182 : vector<2x32xf32>
    %201 = arith.mulf %196, %199 : vector<2x32xf32>
    %202 = arith.addf %200, %201 : vector<2x32xf32>
    %203 = math.tanh %202 : vector<2x32xf32>
    %204 = arith.mulf %198, %203 : vector<2x32xf32>
    %205 = vector.extract_strided_slice %59 {offsets = [14, 0], sizes = [2, 128], strides = [1, 1]} : vector<16x128xf32> to vector<2x128xf32>
    %206 = arith.truncf %204 : vector<2x32xf32> to vector<2x32xbf16>
    %cst_38 = arith.constant dense<0.000000e+00> : vector<2x128xf32>
    %207 = tpu.matmul %206, %54, %cst_38 {dimension_numbers = #tpu.dot_dimension_numbers<[1], [0], [0], [1], [0, 0, 1, 1], [], []>} : vector<2x32xbf16>, vector<32x128xbf16>, vector<2x128xf32> -> vector<2x128xf32>
    %208 = arith.addf %205, %207 : vector<2x128xf32>
    %209 = arith.negf %208 : vector<2x128xf32>
    %210 = math.exp %209 : vector<2x128xf32>
    %cst_39 = arith.constant 1.000000e+00 : f32
    %211 = vector.broadcast %cst_39 : f32 to vector<2x128xf32>
    %212 = arith.addf %211, %210 : vector<2x128xf32>
    %213 = arith.divf %211, %212 : vector<2x128xf32>
    %214 = math.tanh %208 : vector<2x128xf32>
    %215 = arith.select %62, %213, %214 : vector<2x128xi1>, vector<2x128xf32>
    %216 = vector.extract_strided_slice %215 {offsets = [0, 0], sizes = [2, 32], strides = [1, 1]} : vector<2x128xf32> to vector<2x32xf32>
    %217 = vector.extract_strided_slice %215 {offsets = [0, 32], sizes = [2, 32], strides = [1, 1]} : vector<2x128xf32> to vector<2x32xf32>
    %218 = vector.extract_strided_slice %215 {offsets = [0, 64], sizes = [2, 32], strides = [1, 1]} : vector<2x128xf32> to vector<2x32xf32>
    %219 = vector.extract_strided_slice %215 {offsets = [0, 96], sizes = [2, 32], strides = [1, 1]} : vector<2x128xf32> to vector<2x32xf32>
    %220 = arith.mulf %217, %202 : vector<2x32xf32>
    %221 = arith.mulf %216, %219 : vector<2x32xf32>
    %222 = arith.addf %220, %221 : vector<2x32xf32>
    %223 = math.tanh %222 : vector<2x32xf32>
    %224 = arith.mulf %218, %223 : vector<2x32xf32>
    %225 = tpu.concatenate %84, %104, %124, %144, %164, %184, %204, %224 in 0 : vector<2x32xf32>, vector<2x32xf32>, vector<2x32xf32>, vector<2x32xf32>, vector<2x32xf32>, vector<2x32xf32>, vector<2x32xf32>, vector<2x32xf32> -> vector<16x32xf32>
    %c64 = arith.constant 64 : index
    %c0_40 = arith.constant 0 : index
    %226 = vector.load %arg3[%c64, %c0_40] : memref<256x128xbf16, #tpu.memory_space<vmem>>, vector<32x128xbf16>
    %c1 = arith.constant 1 : index
    %c0_41 = arith.constant 0 : index
    %227 = vector.load %arg4[%c1, %c0_41] : memref<96x128xf32, #tpu.memory_space<vmem>>, vector<1x128xf32>
    %228 = arith.truncf %225 : vector<16x32xf32> to vector<16x32xbf16>
    %cst_42 = arith.constant dense<0.000000e+00> : vector<16x128xf32>
    %229 = tpu.matmul %228, %226, %cst_42 {dimension_numbers = #tpu.dot_dimension_numbers<[1], [0], [0], [1], [0, 0, 1, 1], [], []>} : vector<16x32xbf16>, vector<32x128xbf16>, vector<16x128xf32> -> vector<16x128xf32>
    %230 = vector.broadcast %227 : vector<1x128xf32> to vector<16x128xf32>
    %231 = arith.addf %229, %230 : vector<16x128xf32>
    %232 = arith.truncf %231 : vector<16x128xf32> to vector<16x128xbf16>
    %233 = vector.extract_strided_slice %232 {offsets = [0, 0], sizes = [16, 32], strides = [1, 1]} : vector<16x128xbf16> to vector<16x32xbf16>
    %234 = vector.extract_strided_slice %232 {offsets = [0, 32], sizes = [16, 32], strides = [1, 1]} : vector<16x128xbf16> to vector<16x32xbf16>
    %235 = vector.extract_strided_slice %232 {offsets = [0, 64], sizes = [16, 32], strides = [1, 1]} : vector<16x128xbf16> to vector<16x32xbf16>
    %cst_43 = arith.constant dense<0.000000e+00> : vector<16x16xf32>
    %236 = tpu.matmul %233, %234, %cst_43 {dimension_numbers = #tpu.dot_dimension_numbers<[1], [1], [0], [0], [0, 0, 1, 0], [], []>} : vector<16x32xbf16>, vector<16x32xbf16>, vector<16x16xf32> -> vector<16x16xf32>
    %cst_44 = arith.constant 0.176776692 : f32
    %237 = vector.broadcast %cst_44 : f32 to vector<16x16xf32>
    %238 = arith.mulf %236, %237 : vector<16x16xf32>
    %239 = arith.addf %238, %52 : vector<16x16xf32>
    %cst_45 = arith.constant dense<0xFF800000> : vector<16xf32>
    %240 = vector.multi_reduction <maximumf>, %239, %cst_45 [1] : vector<16x16xf32> to vector<16xf32>
    %241 = vector.shape_cast %240 : vector<16xf32> to vector<16x1xf32>
    %242 = vector.broadcast %241 : vector<16x1xf32> to vector<16x16xf32>
    %243 = arith.subf %239, %242 : vector<16x16xf32>
    %244 = math.exp %243 : vector<16x16xf32>
    %cst_46 = arith.constant dense<0.000000e+00> : vector<16xf32>
    %245 = vector.multi_reduction <add>, %244, %cst_46 [1] : vector<16x16xf32> to vector<16xf32>
    %246 = vector.shape_cast %245 : vector<16xf32> to vector<16x1xf32>
    %247 = tpu.reciprocal %246 {approx = true} : vector<16x1xf32> -> vector<16x1xf32>
    %248 = vector.broadcast %247 : vector<16x1xf32> to vector<16x16xf32>
    %249 = arith.mulf %244, %248 : vector<16x16xf32>
    %250 = arith.truncf %249 : vector<16x16xf32> to vector<16x16xbf16>
    %cst_47 = arith.constant dense<0.000000e+00> : vector<16x32xf32>
    %251 = tpu.matmul %250, %235, %cst_47 {dimension_numbers = #tpu.dot_dimension_numbers<[1], [0], [0], [1], [0, 0, 1, 1], [], []>} : vector<16x16xbf16>, vector<16x32xbf16>, vector<16x32xf32> -> vector<16x32xf32>
    %c160 = arith.constant 160 : index
    %c0_48 = arith.constant 0 : index
    %252 = vector.load %arg3[%c160, %c0_48] : memref<256x128xbf16, #tpu.memory_space<vmem>>, vector<32x32xbf16>
    %c4 = arith.constant 4 : index
    %c0_49 = arith.constant 0 : index
    %253 = vector.load %arg4[%c4, %c0_49] : memref<96x128xf32, #tpu.memory_space<vmem>>, vector<1x32xf32>
    %c7 = arith.constant 7 : index
    %c0_50 = arith.constant 0 : index
    %254 = vector.load %arg4[%c7, %c0_50] : memref<96x128xf32, #tpu.memory_space<vmem>>, vector<1x32xf32>
    %c10 = arith.constant 10 : index
    %c0_51 = arith.constant 0 : index
    %255 = vector.load %arg4[%c10, %c0_51] : memref<96x128xf32, #tpu.memory_space<vmem>>, vector<1x32xf32>
    %256 = arith.addf %225, %251 : vector<16x32xf32>
    %257 = arith.truncf %256 : vector<16x32xf32> to vector<16x32xbf16>
    %cst_52 = arith.constant dense<0.000000e+00> : vector<16x32xf32>
    %258 = tpu.matmul %257, %252, %cst_52 {dimension_numbers = #tpu.dot_dimension_numbers<[1], [0], [0], [1], [0, 0, 1, 1], [], []>} : vector<16x32xbf16>, vector<32x32xbf16>, vector<16x32xf32> -> vector<16x32xf32>
    %259 = vector.broadcast %253 : vector<1x32xf32> to vector<16x32xf32>
    %260 = arith.addf %258, %259 : vector<16x32xf32>
    %cst_53 = arith.constant dense<0.000000e+00> : vector<16xf32>
    %261 = vector.multi_reduction <add>, %260, %cst_53 [1] : vector<16x32xf32> to vector<16xf32>
    %262 = vector.shape_cast %261 : vector<16xf32> to vector<16x1xf32>
    %cst_54 = arith.constant 3.200000e+01 : f32
    %263 = vector.broadcast %cst_54 : f32 to vector<16x1xf32>
    %264 = arith.divf %262, %263 : vector<16x1xf32>
    %265 = vector.broadcast %264 : vector<16x1xf32> to vector<16x32xf32>
    %266 = arith.subf %260, %265 : vector<16x32xf32>
    %267 = arith.mulf %266, %266 : vector<16x32xf32>
    %cst_55 = arith.constant dense<0.000000e+00> : vector<16xf32>
    %268 = vector.multi_reduction <add>, %267, %cst_55 [1] : vector<16x32xf32> to vector<16xf32>
    %269 = vector.shape_cast %268 : vector<16xf32> to vector<16x1xf32>
    %cst_56 = arith.constant 3.200000e+01 : f32
    %270 = vector.broadcast %cst_56 : f32 to vector<16x1xf32>
    %271 = arith.divf %269, %270 : vector<16x1xf32>
    %272 = vector.broadcast %264 : vector<16x1xf32> to vector<16x32xf32>
    %273 = arith.subf %260, %272 : vector<16x32xf32>
    %cst_57 = arith.constant 9.99999974E-6 : f32
    %274 = vector.broadcast %cst_57 : f32 to vector<16x1xf32>
    %275 = arith.addf %271, %274 : vector<16x1xf32>
    %276 = math.rsqrt %275 : vector<16x1xf32>
    %277 = vector.broadcast %276 : vector<16x1xf32> to vector<16x32xf32>
    %278 = arith.mulf %273, %277 : vector<16x32xf32>
    %279 = vector.broadcast %254 : vector<1x32xf32> to vector<16x32xf32>
    %280 = arith.mulf %278, %279 : vector<16x32xf32>
    %281 = vector.broadcast %255 : vector<1x32xf32> to vector<16x32xf32>
    %282 = arith.addf %280, %281 : vector<16x32xf32>
    %c96 = arith.constant 96 : index
    %c0_58 = arith.constant 0 : index
    %283 = vector.load %arg3[%c96, %c0_58] : memref<256x128xbf16, #tpu.memory_space<vmem>>, vector<32x128xbf16>
    %c2 = arith.constant 2 : index
    %c0_59 = arith.constant 0 : index
    %284 = vector.load %arg4[%c2, %c0_59] : memref<96x128xf32, #tpu.memory_space<vmem>>, vector<1x128xf32>
    %285 = arith.truncf %282 : vector<16x32xf32> to vector<16x32xbf16>
    %cst_60 = arith.constant dense<0.000000e+00> : vector<16x128xf32>
    %286 = tpu.matmul %285, %283, %cst_60 {dimension_numbers = #tpu.dot_dimension_numbers<[1], [0], [0], [1], [0, 0, 1, 1], [], []>} : vector<16x32xbf16>, vector<32x128xbf16>, vector<16x128xf32> -> vector<16x128xf32>
    %287 = vector.broadcast %284 : vector<1x128xf32> to vector<16x128xf32>
    %288 = arith.addf %286, %287 : vector<16x128xf32>
    %289 = arith.truncf %288 : vector<16x128xf32> to vector<16x128xbf16>
    %290 = vector.extract_strided_slice %289 {offsets = [0, 0], sizes = [16, 32], strides = [1, 1]} : vector<16x128xbf16> to vector<16x32xbf16>
    %291 = vector.extract_strided_slice %289 {offsets = [0, 32], sizes = [16, 32], strides = [1, 1]} : vector<16x128xbf16> to vector<16x32xbf16>
    %292 = vector.extract_strided_slice %289 {offsets = [0, 64], sizes = [16, 32], strides = [1, 1]} : vector<16x128xbf16> to vector<16x32xbf16>
    %cst_61 = arith.constant dense<0.000000e+00> : vector<16x16xf32>
    %293 = tpu.matmul %290, %291, %cst_61 {dimension_numbers = #tpu.dot_dimension_numbers<[1], [1], [0], [0], [0, 0, 1, 0], [], []>} : vector<16x32xbf16>, vector<16x32xbf16>, vector<16x16xf32> -> vector<16x16xf32>
    %cst_62 = arith.constant 0.176776692 : f32
    %294 = vector.broadcast %cst_62 : f32 to vector<16x16xf32>
    %295 = arith.mulf %293, %294 : vector<16x16xf32>
    %296 = arith.addf %295, %52 : vector<16x16xf32>
    %cst_63 = arith.constant dense<0xFF800000> : vector<16xf32>
    %297 = vector.multi_reduction <maximumf>, %296, %cst_63 [1] : vector<16x16xf32> to vector<16xf32>
    %298 = vector.shape_cast %297 : vector<16xf32> to vector<16x1xf32>
    %299 = vector.broadcast %298 : vector<16x1xf32> to vector<16x16xf32>
    %300 = arith.subf %296, %299 : vector<16x16xf32>
    %301 = math.exp %300 : vector<16x16xf32>
    %cst_64 = arith.constant dense<0.000000e+00> : vector<16xf32>
    %302 = vector.multi_reduction <add>, %301, %cst_64 [1] : vector<16x16xf32> to vector<16xf32>
    %303 = vector.shape_cast %302 : vector<16xf32> to vector<16x1xf32>
    %304 = tpu.reciprocal %303 {approx = true} : vector<16x1xf32> -> vector<16x1xf32>
    %305 = vector.broadcast %304 : vector<16x1xf32> to vector<16x16xf32>
    %306 = arith.mulf %301, %305 : vector<16x16xf32>
    %307 = arith.truncf %306 : vector<16x16xf32> to vector<16x16xbf16>
    %cst_65 = arith.constant dense<0.000000e+00> : vector<16x32xf32>
    %308 = tpu.matmul %307, %292, %cst_65 {dimension_numbers = #tpu.dot_dimension_numbers<[1], [0], [0], [1], [0, 0, 1, 1], [], []>} : vector<16x16xbf16>, vector<16x32xbf16>, vector<16x32xf32> -> vector<16x32xf32>
    %c192 = arith.constant 192 : index
    %c0_66 = arith.constant 0 : index
    %309 = vector.load %arg3[%c192, %c0_66] : memref<256x128xbf16, #tpu.memory_space<vmem>>, vector<32x32xbf16>
    %c5 = arith.constant 5 : index
    %c0_67 = arith.constant 0 : index
    %310 = vector.load %arg4[%c5, %c0_67] : memref<96x128xf32, #tpu.memory_space<vmem>>, vector<1x32xf32>
    %c8 = arith.constant 8 : index
    %c0_68 = arith.constant 0 : index
    %311 = vector.load %arg4[%c8, %c0_68] : memref<96x128xf32, #tpu.memory_space<vmem>>, vector<1x32xf32>
    %c11 = arith.constant 11 : index
    %c0_69 = arith.constant 0 : index
    %312 = vector.load %arg4[%c11, %c0_69] : memref<96x128xf32, #tpu.memory_space<vmem>>, vector<1x32xf32>
    %313 = arith.addf %282, %308 : vector<16x32xf32>
    %314 = arith.truncf %313 : vector<16x32xf32> to vector<16x32xbf16>
    %cst_70 = arith.constant dense<0.000000e+00> : vector<16x32xf32>
    %315 = tpu.matmul %314, %309, %cst_70 {dimension_numbers = #tpu.dot_dimension_numbers<[1], [0], [0], [1], [0, 0, 1, 1], [], []>} : vector<16x32xbf16>, vector<32x32xbf16>, vector<16x32xf32> -> vector<16x32xf32>
    %316 = vector.broadcast %310 : vector<1x32xf32> to vector<16x32xf32>
    %317 = arith.addf %315, %316 : vector<16x32xf32>
    %cst_71 = arith.constant dense<0.000000e+00> : vector<16xf32>
    %318 = vector.multi_reduction <add>, %317, %cst_71 [1] : vector<16x32xf32> to vector<16xf32>
    %319 = vector.shape_cast %318 : vector<16xf32> to vector<16x1xf32>
    %cst_72 = arith.constant 3.200000e+01 : f32
    %320 = vector.broadcast %cst_72 : f32 to vector<16x1xf32>
    %321 = arith.divf %319, %320 : vector<16x1xf32>
    %322 = vector.broadcast %321 : vector<16x1xf32> to vector<16x32xf32>
    %323 = arith.subf %317, %322 : vector<16x32xf32>
    %324 = arith.mulf %323, %323 : vector<16x32xf32>
    %cst_73 = arith.constant dense<0.000000e+00> : vector<16xf32>
    %325 = vector.multi_reduction <add>, %324, %cst_73 [1] : vector<16x32xf32> to vector<16xf32>
    %326 = vector.shape_cast %325 : vector<16xf32> to vector<16x1xf32>
    %cst_74 = arith.constant 3.200000e+01 : f32
    %327 = vector.broadcast %cst_74 : f32 to vector<16x1xf32>
    %328 = arith.divf %326, %327 : vector<16x1xf32>
    %329 = vector.broadcast %321 : vector<16x1xf32> to vector<16x32xf32>
    %330 = arith.subf %317, %329 : vector<16x32xf32>
    %cst_75 = arith.constant 9.99999974E-6 : f32
    %331 = vector.broadcast %cst_75 : f32 to vector<16x1xf32>
    %332 = arith.addf %328, %331 : vector<16x1xf32>
    %333 = math.rsqrt %332 : vector<16x1xf32>
    %334 = vector.broadcast %333 : vector<16x1xf32> to vector<16x32xf32>
    %335 = arith.mulf %330, %334 : vector<16x32xf32>
    %336 = vector.broadcast %311 : vector<1x32xf32> to vector<16x32xf32>
    %337 = arith.mulf %335, %336 : vector<16x32xf32>
    %338 = vector.broadcast %312 : vector<1x32xf32> to vector<16x32xf32>
    %339 = arith.addf %337, %338 : vector<16x32xf32>
    %c128 = arith.constant 128 : index
    %c0_76 = arith.constant 0 : index
    %340 = vector.load %arg3[%c128, %c0_76] : memref<256x128xbf16, #tpu.memory_space<vmem>>, vector<32x128xbf16>
    %c3 = arith.constant 3 : index
    %c0_77 = arith.constant 0 : index
    %341 = vector.load %arg4[%c3, %c0_77] : memref<96x128xf32, #tpu.memory_space<vmem>>, vector<1x128xf32>
    %342 = arith.truncf %339 : vector<16x32xf32> to vector<16x32xbf16>
    %cst_78 = arith.constant dense<0.000000e+00> : vector<16x128xf32>
    %343 = tpu.matmul %342, %340, %cst_78 {dimension_numbers = #tpu.dot_dimension_numbers<[1], [0], [0], [1], [0, 0, 1, 1], [], []>} : vector<16x32xbf16>, vector<32x128xbf16>, vector<16x128xf32> -> vector<16x128xf32>
    %344 = vector.broadcast %341 : vector<1x128xf32> to vector<16x128xf32>
    %345 = arith.addf %343, %344 : vector<16x128xf32>
    %346 = arith.truncf %345 : vector<16x128xf32> to vector<16x128xbf16>
    %347 = vector.extract_strided_slice %346 {offsets = [0, 0], sizes = [16, 32], strides = [1, 1]} : vector<16x128xbf16> to vector<16x32xbf16>
    %348 = vector.extract_strided_slice %346 {offsets = [0, 32], sizes = [16, 32], strides = [1, 1]} : vector<16x128xbf16> to vector<16x32xbf16>
    %349 = vector.extract_strided_slice %346 {offsets = [0, 64], sizes = [16, 32], strides = [1, 1]} : vector<16x128xbf16> to vector<16x32xbf16>
    %cst_79 = arith.constant dense<0.000000e+00> : vector<16x16xf32>
    %350 = tpu.matmul %347, %348, %cst_79 {dimension_numbers = #tpu.dot_dimension_numbers<[1], [1], [0], [0], [0, 0, 1, 0], [], []>} : vector<16x32xbf16>, vector<16x32xbf16>, vector<16x16xf32> -> vector<16x16xf32>
    %cst_80 = arith.constant 0.176776692 : f32
    %351 = vector.broadcast %cst_80 : f32 to vector<16x16xf32>
    %352 = arith.mulf %350, %351 : vector<16x16xf32>
    %353 = arith.addf %352, %52 : vector<16x16xf32>
    %cst_81 = arith.constant dense<0xFF800000> : vector<16xf32>
    %354 = vector.multi_reduction <maximumf>, %353, %cst_81 [1] : vector<16x16xf32> to vector<16xf32>
    %355 = vector.shape_cast %354 : vector<16xf32> to vector<16x1xf32>
    %356 = vector.broadcast %355 : vector<16x1xf32> to vector<16x16xf32>
    %357 = arith.subf %353, %356 : vector<16x16xf32>
    %358 = math.exp %357 : vector<16x16xf32>
    %cst_82 = arith.constant dense<0.000000e+00> : vector<16xf32>
    %359 = vector.multi_reduction <add>, %358, %cst_82 [1] : vector<16x16xf32> to vector<16xf32>
    %360 = vector.shape_cast %359 : vector<16xf32> to vector<16x1xf32>
    %361 = tpu.reciprocal %360 {approx = true} : vector<16x1xf32> -> vector<16x1xf32>
    %362 = vector.broadcast %361 : vector<16x1xf32> to vector<16x16xf32>
    %363 = arith.mulf %358, %362 : vector<16x16xf32>
    %364 = arith.truncf %363 : vector<16x16xf32> to vector<16x16xbf16>
    %cst_83 = arith.constant dense<0.000000e+00> : vector<16x32xf32>
    %365 = tpu.matmul %364, %349, %cst_83 {dimension_numbers = #tpu.dot_dimension_numbers<[1], [0], [0], [1], [0, 0, 1, 1], [], []>} : vector<16x16xbf16>, vector<16x32xbf16>, vector<16x32xf32> -> vector<16x32xf32>
    %c224 = arith.constant 224 : index
    %c0_84 = arith.constant 0 : index
    %366 = vector.load %arg3[%c224, %c0_84] : memref<256x128xbf16, #tpu.memory_space<vmem>>, vector<32x32xbf16>
    %c6 = arith.constant 6 : index
    %c0_85 = arith.constant 0 : index
    %367 = vector.load %arg4[%c6, %c0_85] : memref<96x128xf32, #tpu.memory_space<vmem>>, vector<1x32xf32>
    %c9 = arith.constant 9 : index
    %c0_86 = arith.constant 0 : index
    %368 = vector.load %arg4[%c9, %c0_86] : memref<96x128xf32, #tpu.memory_space<vmem>>, vector<1x32xf32>
    %c12 = arith.constant 12 : index
    %c0_87 = arith.constant 0 : index
    %369 = vector.load %arg4[%c12, %c0_87] : memref<96x128xf32, #tpu.memory_space<vmem>>, vector<1x32xf32>
    %370 = arith.addf %339, %365 : vector<16x32xf32>
    %371 = arith.truncf %370 : vector<16x32xf32> to vector<16x32xbf16>
    %cst_88 = arith.constant dense<0.000000e+00> : vector<16x32xf32>
    %372 = tpu.matmul %371, %366, %cst_88 {dimension_numbers = #tpu.dot_dimension_numbers<[1], [0], [0], [1], [0, 0, 1, 1], [], []>} : vector<16x32xbf16>, vector<32x32xbf16>, vector<16x32xf32> -> vector<16x32xf32>
    %373 = vector.broadcast %367 : vector<1x32xf32> to vector<16x32xf32>
    %374 = arith.addf %372, %373 : vector<16x32xf32>
    %cst_89 = arith.constant dense<0.000000e+00> : vector<16xf32>
    %375 = vector.multi_reduction <add>, %374, %cst_89 [1] : vector<16x32xf32> to vector<16xf32>
    %376 = vector.shape_cast %375 : vector<16xf32> to vector<16x1xf32>
    %cst_90 = arith.constant 3.200000e+01 : f32
    %377 = vector.broadcast %cst_90 : f32 to vector<16x1xf32>
    %378 = arith.divf %376, %377 : vector<16x1xf32>
    %379 = vector.broadcast %378 : vector<16x1xf32> to vector<16x32xf32>
    %380 = arith.subf %374, %379 : vector<16x32xf32>
    %381 = arith.mulf %380, %380 : vector<16x32xf32>
    %cst_91 = arith.constant dense<0.000000e+00> : vector<16xf32>
    %382 = vector.multi_reduction <add>, %381, %cst_91 [1] : vector<16x32xf32> to vector<16xf32>
    %383 = vector.shape_cast %382 : vector<16xf32> to vector<16x1xf32>
    %cst_92 = arith.constant 3.200000e+01 : f32
    %384 = vector.broadcast %cst_92 : f32 to vector<16x1xf32>
    %385 = arith.divf %383, %384 : vector<16x1xf32>
    %386 = vector.broadcast %378 : vector<16x1xf32> to vector<16x32xf32>
    %387 = arith.subf %374, %386 : vector<16x32xf32>
    %cst_93 = arith.constant 9.99999974E-6 : f32
    %388 = vector.broadcast %cst_93 : f32 to vector<16x1xf32>
    %389 = arith.addf %385, %388 : vector<16x1xf32>
    %390 = math.rsqrt %389 : vector<16x1xf32>
    %391 = vector.broadcast %390 : vector<16x1xf32> to vector<16x32xf32>
    %392 = arith.mulf %387, %391 : vector<16x32xf32>
    %393 = vector.broadcast %368 : vector<1x32xf32> to vector<16x32xf32>
    %394 = arith.mulf %392, %393 : vector<16x32xf32>
    %395 = vector.broadcast %369 : vector<1x32xf32> to vector<16x32xf32>
    %396 = arith.addf %394, %395 : vector<16x32xf32>
    %397 = vector.shape_cast %396 : vector<16x32xf32> to vector<8x2x32xf32>
    %cst_94 = arith.constant dense<0.000000e+00> : vector<2x32xf32>
    %398 = vector.multi_reduction <add>, %397, %cst_94 [0] : vector<8x2x32xf32> to vector<2x32xf32>
    %cst_95 = arith.constant 8.000000e+00 : f32
    %399 = vector.broadcast %cst_95 : f32 to vector<2x32xf32>
    %400 = arith.divf %398, %399 : vector<2x32xf32>
    %c32_96 = arith.constant 32 : index
    %c0_97 = arith.constant 0 : index
    %401 = vector.load %arg4[%c32_96, %c0_97] : memref<96x128xf32, #tpu.memory_space<vmem>>, vector<32x32xf32>
    %c13 = arith.constant 13 : index
    %c0_98 = arith.constant 0 : index
    %402 = vector.load %arg4[%c13, %c0_98] : memref<96x128xf32, #tpu.memory_space<vmem>>, vector<1x32xf32>
    %c64_99 = arith.constant 64 : index
    %c0_100 = arith.constant 0 : index
    %403 = vector.load %arg4[%c64_99, %c0_100] : memref<96x128xf32, #tpu.memory_space<vmem>>, vector<32x32xf32>
    %c14 = arith.constant 14 : index
    %c0_101 = arith.constant 0 : index
    %404 = vector.load %arg4[%c14, %c0_101] : memref<96x128xf32, #tpu.memory_space<vmem>>, vector<1x32xf32>
    %cst_102 = arith.constant dense<0.000000e+00> : vector<2x32xf32>
    %405 = tpu.matmul %400, %401, %cst_102 {dimension_numbers = #tpu.dot_dimension_numbers<[1], [0], [0], [1], [0, 0, 1, 1], [], []>} : vector<2x32xf32>, vector<32x32xf32>, vector<2x32xf32> -> vector<2x32xf32>
    %406 = vector.broadcast %402 : vector<1x32xf32> to vector<2x32xf32>
    %407 = arith.addf %405, %406 : vector<2x32xf32>
    %cst_103 = arith.constant 0.000000e+00 : f32
    %408 = vector.broadcast %cst_103 : f32 to vector<2x32xf32>
    %409 = arith.maximumf %407, %408 : vector<2x32xf32>
    %cst_104 = arith.constant dense<0.000000e+00> : vector<2x32xf32>
    %410 = tpu.matmul %409, %403, %cst_104 {dimension_numbers = #tpu.dot_dimension_numbers<[1], [0], [0], [1], [0, 0, 1, 1], [], []>} : vector<2x32xf32>, vector<32x32xf32>, vector<2x32xf32> -> vector<2x32xf32>
    %411 = vector.broadcast %404 : vector<1x32xf32> to vector<2x32xf32>
    %412 = arith.addf %410, %411 : vector<2x32xf32>
    %413 = vector.extract_strided_slice %412 {offsets = [0, 0], sizes = [2, 2], strides = [1, 1]} : vector<2x32xf32> to vector<2x2xf32>
    %c0_105 = arith.constant 0 : index
    %c0_106 = arith.constant 0 : index
    %414 = vector.load %arg5[%c0_105, %c0_106] : memref<2x2xf32, #tpu.memory_space<vmem>>, vector<2x2xf32>
    tpu.vector_store %arg5[%c0_105, %c0_106], %413 {strides = array<i32>} : memref<2x2xf32, #tpu.memory_space<vmem>>, vector<2x2xf32>,
    return
  }
  func.func @transform_0(%arg0: i32) -> (i32, i32) {
    %c0_i32 = arith.constant 0 : i32
    %c0_i32_0 = arith.constant 0 : i32
    %c0_i32_1 = arith.constant 0 : i32
    return %c0_i32, %c0_i32_0 : i32, i32
  }
  func.func @transform_1(%arg0: i32) -> (i32, i32) {
    %c0_i32 = arith.constant 0 : i32
    %c0_i32_0 = arith.constant 0 : i32
    %c0_i32_1 = arith.constant 0 : i32
    return %c0_i32, %c0_i32_0 : i32, i32
  }
  func.func @transform_2(%arg0: i32) -> (i32, i32) {
    %c0_i32 = arith.constant 0 : i32
    %c0_i32_0 = arith.constant 0 : i32
    %c0_i32_1 = arith.constant 0 : i32
    return %c0_i32, %c0_i32_0 : i32, i32
  }
  func.func @transform_3(%arg0: i32) -> (i32, i32) {
    %c0_i32 = arith.constant 0 : i32
    %c0_i32_0 = arith.constant 0 : i32
    %c0_i32_1 = arith.constant 0 : i32
    return %c0_i32, %c0_i32_0 : i32, i32
  }
  func.func @transform_4(%arg0: i32) -> (i32, i32) {
    %c0_i32 = arith.constant 0 : i32
    %c0_i32_0 = arith.constant 0 : i32
    %c0_i32_1 = arith.constant 0 : i32
    return %c0_i32, %c0_i32_0 : i32, i32
  }
}

</mosaic_0001>

<llo_original>
// kernel: transformer_forward.1
$region0: #{transformer_forward.1}
  #allocation0 [shape = 'u32[]', space=smem, size = 0x4, offset = 0x4, fixed_abs, tag = 'smem constant byte address 0x4 - core index']
  #allocation1 [shape = 'u32[144,128]{1,0:T(1,128)}', space=vmem, size = 0x12000, scoped, tag = 'internal scratch']
  %s0 = inlined_call_operand.vmem [shape: s32[16,1], index: 0, kind: input, shape index: {}]
  %s1 = inlined_call_operand.vmem [shape: s32[1,16], index: 1, kind: input, shape index: {}]
  %s2 = inlined_call_operand.hbm [shape: bf16[256,128], index: 2, kind: input, shape index: {}]
  %s3 = inlined_call_operand.hbm [shape: f32[96,128], index: 3, kind: input, shape index: {}]
  %s4 = inlined_call_operand.hbm [shape: f32[2,2], index: 4, kind: output, shape index: {}]
  %s5 = sld [smem:[#allocation0]]
  $region34: #{transformer_forward.1} parent=0
    _
  %s7 = ssub.s32 1, %s5
  %s8 = scalar_select 0, %s7, %s5
  $region1: #{transformer_forward.1} parent=0
    #allocation2 [shape = 'u8[65536]{0}', space=vmem, size = 0x10000, scoped, tag = 'input window, operand 2, single buffered']
    #allocation3 [shape = 's32[1]{0}', space=sflag, size = 0x4, scoped, tag = 'scoped memory for transformer_forward.1']
    #allocation4 [shape = 's32[1]{0}', space=sflag, size = 0x4, scoped, tag = 'scoped memory for transformer_forward.1']
    #allocation5 [shape = 'u8[49152]{0}', space=vmem, size = 0xc000, scoped, tag = 'input window, operand 3, single buffered']
    #allocation6 [shape = 's32[1]{0}', space=sflag, size = 0x4, scoped, tag = 'scoped memory for transformer_forward.1']
    #allocation7 [shape = 'u8[1024]{0}', space=vmem, size = 0x400, scoped, tag = 'output window, operand 0, single buffered']
    %9 = vsyncpa [#allocation3], 0
    %10 = vsyncpa [#allocation6], 0
    %11 = vsyncpa [#allocation4], 0
    // Predicated region
    $region2: #{transformer_forward.1} parent=1 // pred_check
      _
    $region3: #{transformer_forward.1} parent=1 // pred_check_branch
      %13 = sbr.rel (0) target = $region5
    $region4: #{transformer_forward.1} parent=1 // pred_region
      _
    $region5: #{transformer_forward.1} parent=1 // pred_fallthru
      _
    // Predicated region
    $region6: #{transformer_forward.1} parent=1 // pred_check
      _
    $region7: #{transformer_forward.1} parent=1 // pred_check_branch
      %15 = sbr.rel (0) target = $region9
    $region8: #{transformer_forward.1} parent=1 // pred_region
      _
    $region9: #{transformer_forward.1} parent=1 // pred_fallthru
      _
    // Predicated region
    $region10: #{transformer_forward.1} parent=1 // pred_check
      _
    $region11: #{transformer_forward.1} parent=1 // pred_check_branch
      %17 = sbr.rel (0) target = $region13
    $region12: #{transformer_forward.1} parent=1 // pred_region
      %s19 = ssub.s32 2048, 2048
      %20 = vsyncadd [#allocation3], %s19
      %s21 = sshll.u32 [#allocation2], 4
      %s22 = int_to_ptr.vmem [resolvable:$true] %s21
      %27 = dma.hbm_to_vmem [thread:$0]  %s2, 2048, %s22, [#allocation3], 64, 64, 4
    $region13: #{transformer_forward.1} parent=1 // pred_fallthru
      _
    // Predicated region
    $region14: #{transformer_forward.1} parent=1 // pred_check
      _
    $region15: #{transformer_forward.1} parent=1 // pred_check_branch
      %29 = sbr.rel (0) target = $region17
    $region16: #{transformer_forward.1} parent=1 // pred_region
      %s31 = ssub.s32 1536, 1536
      %32 = vsyncadd [#allocation6], %s31
      %s33 = sshll.u32 [#allocation5], 4
      %s34 = int_to_ptr.vmem [resolvable:$true] %s33
      %39 = dma.hbm_to_vmem [thread:$0]  %s3, 1536, %s34, [#allocation6], 128, 128, 8
    $region17: #{transformer_forward.1} parent=1 // pred_fallthru
      _
    // Predicated region
    $region18: #{transformer_forward.1} parent=1 // pred_check
      _
    $region19: #{transformer_forward.1} parent=1 // pred_check_branch
      %41 = sbr.rel (0) target = $region21
    $region20: #{transformer_forward.1} parent=1 // pred_region
      %42 = dma.done [#allocation3], 2048
    $region21: #{transformer_forward.1} parent=1 // pred_fallthru
      _
    // Predicated region
    $region22: #{transformer_forward.1} parent=1 // pred_check
      _
    $region23: #{transformer_forward.1} parent=1 // pred_check_branch
      %44 = sbr.rel (0) target = $region25
    $region24: #{transformer_forward.1} parent=1 // pred_region
      %45 = dma.done [#allocation6], 1536
    $region25: #{transformer_forward.1} parent=1 // pred_fallthru
      _
    %v47 = vld [vmem:[%s0] sm:$0xff]
    %v48 = vld [vmem:[%s0 + $0x8] sm:$0xff]
    %v49 = vld [vmem:[%s1] sm:$0x1]
    %v50 = vld [vmem:[#allocation5 + $0x10] sm:$0xff]
    %v51 = vld [vmem:[#allocation5 + $0x18] sm:$0xff]
    %v52 = vlaneseq
    %v53 = vand.u32 %v52, 127
    %54 = vset.pattern.permute.xlu0 0
    %55 = vperm.xlu0 %54, %v47
    %v56 = vpop.permute.xlu0 %55
    %57 = vset.pattern.permute.xlu0 0
    %58 = vperm.xlu0 %57, %v48
    %v59 = vpop.permute.xlu0 %58
    %vm60 = vcmp.eq.s32.totalorder %v53, %v56
    %vm61 = vcmp.eq.s32.totalorder %v53, %v59
    %v62 = vsel %vm60, 1, 0
    %v63 = vsel %vm61, 1, 0
    %v64 = vcvt.s32.f32 %v62
    %v65 = vcvt.s32.f32 %v63
    %vm66 = vcmask 130048
    %v68 = vsel %vm66, %v64, 0
    %v71 = vsel %vm66, %v65, 0
    %73 = vmatprep.subr.mxu0 0.0
    %74 = vmatpush1.msra.mxu0 %v50
    %75 = vmatprep.subr.mxu0 0.0
    %76 = vmatpush1.msra.mxu0 %v51
    %77 = vmatprep.subr.mxu0 0.0
    %78 = vmatpush1.msra.mxu0 0.0
    %79 = vmatprep.subr.mxu0 0.0
    %80 = vmatpush1.msra.mxu0 0.0
    %81 = vmatprep.subr.mxu0 0.0
    %82 = vmatpush1.msra.mxu0 0.0
    %83 = vmatprep.subr.mxu0 0.0
    %84 = vmatpush1.msra.mxu0 0.0
    %85 = vmatprep.subr.mxu0 0.0
    %86 = vmatpush1.msra.mxu0 0.0
    %87 = vmatprep.subr.mxu0 0.0
    %88 = vmatpush1.msra.mxu0 0.0
    %89 = vmatprep.subr.mxu0 0.0
    %90 = vmatpush1.msra.mxu0 0.0
    %91 = vmatprep.subr.mxu0 0.0
    %92 = vmatpush1.msra.mxu0 0.0
    %93 = vmatprep.subr.mxu0 0.0
    %94 = vmatpush1.msra.mxu0 0.0
    %95 = vmatprep.subr.mxu0 0.0
    %96 = vmatpush1.msra.mxu0 0.0
    %97 = vmatprep.subr.mxu0 0.0
    %98 = vmatpush1.msra.mxu0 0.0
    %99 = vmatprep.subr.mxu0 0.0
    %100 = vmatpush1.msra.mxu0 0.0
    %101 = vmatprep.subr.mxu0 0.0
    %102 = vmatpush1.msra.mxu0 0.0
    %103 = vmatprep.subr.mxu0 0.0
    %104 = vmatpush1.msra.mxu0 0.0
    %105 = vmatprep.subr.mxu0 0.0
    %106 = vmatpush1.msra.mxu0 0.0
    %107 = vmatprep.subr.mxu0 0.0
    %108 = vmatpush1.msra.mxu0 0.0
    %109 = vmatprep.subr.mxu0 0.0
    %110 = vmatpush1.msra.mxu0 0.0
    %111 = vmatprep.subr.mxu0 0.0
    %112 = vmatpush1.msra.mxu0 0.0
    %113 = vmatprep.subr.mxu0 0.0
    %114 = vmatpush1.msra.mxu0 0.0
    %115 = vmatprep.subr.mxu0 0.0
    %116 = vmatpush1.msra.mxu0 0.0
    %117 = vmatprep.subr.mxu0 0.0
    %118 = vmatpush1.msra.mxu0 0.0
    %119 = vmatprep.subr.mxu0 0.0
    %120 = vmatpush1.msra.mxu0 0.0
    %121 = vmatprep.subr.mxu0 0.0
    %122 = vmatpush1.msra.mxu0 0.0
    %123 = vmatprep.subr.mxu0 0.0
    %124 = vmatpush1.msra.mxu0 0.0
    %125 = vmatprep.subr.mxu0 0.0
    %126 = vmatpush1.msra.mxu0 0.0
    %127 = vmatprep.subr.mxu0 0.0
    %128 = vmatpush1.msra.mxu0 0.0
    %129 = vmatprep.subr.mxu0 0.0
    %130 = vmatpush1.msra.mxu0 0.0
    %131 = vmatprep.subr.mxu0 0.0
    %132 = vmatpush1.msra.mxu0 0.0
    %133 = vmatprep.subr.mxu0 0.0
    %134 = vmatpush1.msra.mxu0 0.0
    %135 = vmatprep.subr.mxu0 0.0
    %136 = vmatpush1.msra.mxu0 0.0
    %137 = vmatprep.mubr.f32.mxu0 0.0
    %138 = vmatmul.mubr.f32.gmra.mrb[0].mxu0 %v68
    %v139 = vpop.f32.mrb[0].mxu0
    %v140 = vadd.f32 0.0, %v139
    %v141 = vpop.f32.mrb[0].mxu0
    %142 = vmatprep.mubr.f32.mxu0 0.0
    %143 = vmatmul.mubr.f32.gmra.mrb[0].mxu0 %v71
    %v144 = vpop.f32.mrb[0].mxu0
    %v145 = vadd.f32 0.0, %v144
    %v146 = vpop.f32.mrb[0].mxu0
    %147 = vdwg.mxu0
    %v148 = vlaneseq
    %v149 = vshrl.u32 %v148, 7
    %v150 = vadd.s32 %v149, 8
    %vm151 = vcmp.lt.s32.totalorder %v149, 0
    %v152 = vsub.s32 0, %v149
    %v153 = vsel %vm151, %v152, %v149
    %v154 = vshrl.u32 %v153, 1
    %v155 = vand.u32 %v153, 1
    %v156 = vsub.s32 0, %v155
    %v157 = vsel %vm151, %v156, %v155
    %vm158 = vcmp.lt.s32.totalorder %v150, 0
    %v159 = vsub.s32 0, %v150
    %v160 = vsel %vm158, %v159, %v150
    %v161 = vshrl.u32 %v160, 1
    %v162 = vand.u32 %v160, 1
    %v163 = vsub.s32 0, %v162
    %v164 = vsel %vm158, %v163, %v162
    %vm165 = vcmp.ne.s32.totalorder %v157, 0
    %vm166 = vcmp.ne.s32.totalorder %v164, 0
    %vm167 = vcmp.lt.s32.totalorder %v157, 0
    %vm168 = vcmp.lt.s32.totalorder %v164, 0
    %vm169 = vmand %vm167, %vm165
    %vm170 = vmand %vm168, %vm166
    %v171 = vadd.s32 %v157, 2
    %v172 = vadd.s32 %v164, 2
    %v173 = vsel %vm169, %v171, %v157
    %v174 = vsel %vm170, %v172, %v164
    %vm175 = vcmp.lt.s32.totalorder %v53, 0
    %v176 = vsub.s32 0, %v53
    %v177 = vsel %vm175, %v176, %v53
    %v178 = vshrl.u32 %v177, 1
    %v179 = vand.u32 %v177, 1
    %v180 = vsub.s32 0, %v179
    %v181 = vsel %vm175, %v180, %v179
    %vm182 = vcmp.ne.s32.totalorder %v181, 0
    %vm183 = vcmp.lt.s32.totalorder %v181, 0
    %vm184 = vmand %vm183, %vm182
    %v185 = vadd.s32 %v181, 2
    %v186 = vsel %vm184, %v185, %v181
    %vm187 = vcmp.eq.s32.totalorder %v173, %v186
    %vm188 = vcmp.eq.s32.totalorder %v174, %v186
    %vm189 = vcmp.ne.s32.totalorder %v49, 0
    %v190 = vsel %vm189, 1, 0
    %v191 = vlaneseq
    %v192 = vshrl.u32 %v191, 7
    %v193 = vsub.s32 0, %v192
    %v194 = vrot.slane %v190, %v193
    %vm195 = vcmp.eq.s32.totalorder %v194, 1
    %vm196 = vmand %vm187, %vm195
    %vm197 = vmand %vm188, %vm195
    %v198 = vsel %vm196, 0.0, -1e+30
    %v199 = vsel %vm197, 0.0, -1e+30
    %v200 = vld [vmem:[#allocation2] sm:$0xf]
    %v201 = vld [vmem:[#allocation2 + $0x4] sm:$0xf]
    %v202 = vld [vmem:[#allocation2 + $0x8] sm:$0xf]
    %v203 = vld [vmem:[#allocation2 + $0xc] sm:$0xf]
    %v204 = vld [vmem:[#allocation2 + $0x10] sm:$0xf]
    %v205 = vld [vmem:[#allocation2 + $0x14] sm:$0xf]
    %v206 = vld [vmem:[#allocation2 + $0x18] sm:$0xf]
    %v207 = vld [vmem:[#allocation2 + $0x1c] sm:$0xf]
    %v208 = vld [vmem:[#allocation5] sm:$0x1]
    %v209 = vpack.c.bf16 %v145, %v140
    %v210 = vlaneseq
    %v211 = vshrl.u32 %v210, 7
    %v212 = vsub.s32 0, %v211
    %v213 = vrot.slane %v208, %v212
    %v218 = vunpack.c.l.b16 %v200
    %v219 = vunpack.c.l.b16 %v201
    %v220 = vunpack.c.l.b16 %v202
    %v221 = vunpack.c.l.b16 %v203
    %v222 = vpack.c.b16 %v219, %v218
    %v223 = vpack.c.b16 %v221, %v220
    %vm226 = vcmask 261120
    %v228 = vsel %vm226, %v209, 0
    %230 = vmatprep.subr.bf16.mxu0 0
    %231 = vmatpush1.bf16.msra.mxu0 %v222
    %232 = vmatprep.subr.bf16.mxu0 0
    %233 = vmatpush1.bf16.msra.mxu0 %v223
    %234 = vmatprep.subr.bf16.mxu0 0
    %235 = vmatpush1.bf16.msra.mxu0 0
    %236 = vmatprep.subr.bf16.mxu0 0
    %237 = vmatpush1.bf16.msra.mxu0 0
    %238 = vmatprep.subr.bf16.mxu0 0
    %239 = vmatpush1.bf16.msra.mxu0 0
    %240 = vmatprep.subr.bf16.mxu0 0
    %241 = vmatpush1.bf16.msra.mxu0 0
    %242 = vmatprep.subr.bf16.mxu0 0
    %243 = vmatpush1.bf16.msra.mxu0 0
    %244 = vmatprep.subr.bf16.mxu0 0
    %245 = vmatpush1.bf16.msra.mxu0 0
    %246 = vmatprep.subr.bf16.mxu0 0
    %247 = vmatpush1.bf16.msra.mxu0 0
    %248 = vmatprep.subr.bf16.mxu0 0
    %249 = vmatpush1.bf16.msra.mxu0 0
    %250 = vmatprep.subr.bf16.mxu0 0
    %251 = vmatpush1.bf16.msra.mxu0 0
    %252 = vmatprep.subr.bf16.mxu0 0
    %253 = vmatpush1.bf16.msra.mxu0 0
    %254 = vmatprep.subr.bf16.mxu0 0
    %255 = vmatpush1.bf16.msra.mxu0 0
    %256 = vmatprep.subr.bf16.mxu0 0
    %257 = vmatpush1.bf16.msra.mxu0 0
    %258 = vmatprep.subr.bf16.mxu0 0
    %259 = vmatpush1.bf16.msra.mxu0 0
    %260 = vmatprep.subr.bf16.mxu0 0
    %261 = vmatpush1.bf16.msra.mxu0 0
    %262 = vmatprep.mubr.bf16.mxu0 0
    %263 = vmatmul.mubr.bf16.gmra.mrb[0].mxu0 %v228
    %v264 = vpop.f32.mrb[0].mxu0
    %v265 = vadd.f32 %v213, %v264
    %v266 = vpop.f32.mrb[0].mxu0
    %v267 = vpop.f32.mrb[0].mxu0
    %v268 = vadd.f32 %v213, %v267
    %v269 = vpop.f32.mrb[0].mxu0
    %270 = vdwg.mxu0
    %vm271 = vcmp.lt.s32.totalorder %v53, 96
    %v276 = vunpack.c.l.b16 %v204
    %v277 = vunpack.c.l.b16 %v205
    %v278 = vunpack.c.l.b16 %v206
    %v279 = vunpack.c.l.b16 %v207
    %v280 = vpack.c.b16 %v277, %v276
    %v281 = vpack.c.b16 %v279, %v278
    %v285 = vsel %vm226, 0, 0
    %287 = vmatprep.subr.bf16.mxu0 0
    %288 = vmatpush1.bf16.msra.mxu0 %v280
    %289 = vmatprep.subr.bf16.mxu0 0
    %290 = vmatpush1.bf16.msra.mxu0 %v281
    %291 = vmatprep.subr.bf16.mxu0 0
    %292 = vmatpush1.bf16.msra.mxu0 0
    %293 = vmatprep.subr.bf16.mxu0 0
    %294 = vmatpush1.bf16.msra.mxu0 0
    %295 = vmatprep.subr.bf16.mxu0 0
    %296 = vmatpush1.bf16.msra.mxu0 0
    %297 = vmatprep.subr.bf16.mxu0 0
    %298 = vmatpush1.bf16.msra.mxu0 0
    %299 = vmatprep.subr.bf16.mxu0 0
    %300 = vmatpush1.bf16.msra.mxu0 0
    %301 = vmatprep.subr.bf16.mxu0 0
    %302 = vmatpush1.bf16.msra.mxu0 0
    %303 = vmatprep.subr.bf16.mxu0 0
    %304 = vmatpush1.bf16.msra.mxu0 0
    %305 = vmatprep.subr.bf16.mxu0 0
    %306 = vmatpush1.bf16.msra.mxu0 0
    %307 = vmatprep.subr.bf16.mxu0 0
    %308 = vmatpush1.bf16.msra.mxu0 0
    %309 = vmatprep.subr.bf16.mxu0 0
    %310 = vmatpush1.bf16.msra.mxu0 0
    %311 = vmatprep.subr.bf16.mxu0 0
    %312 = vmatpush1.bf16.msra.mxu0 0
    %313 = vmatprep.subr.bf16.mxu0 0
    %314 = vmatpush1.bf16.msra.mxu0 0
    %315 = vmatprep.subr.bf16.mxu0 0
    %316 = vmatpush1.bf16.msra.mxu0 0
    %317 = vmatprep.subr.bf16.mxu0 0
    %318 = vmatpush1.bf16.msra.mxu0 0
    %319 = vmatprep.mubr.bf16.mxu0 0
    %320 = vmatmul.mubr.bf16.gmra.mrb[0].mxu0 %v285
    %v321 = vpop.f32.mrb[0].mxu0
    %v322 = vadd.f32 0.0, %v321
    %v323 = vpop.f32.mrb[0].mxu0
    %v324 = vpop.f32.mrb[0].mxu0
    %v325 = vpop.f32.mrb[0].mxu0
    %326 = vdwg.mxu0
    %v327 = vadd.f32 %v265, %v322
    %v328 = vxor.u32 %v327, 2147483648
    %v329 = vmul.f32 %v328, 1.442695
    %v330 = vpow.pop %v329
    %v331 = vadd.f32 %v330, 1.0
    %v332 = vrcp.pop %v331
    %v333 = vmul.f32 1.0, %v332
    %v334 = vtanh.pop %v327
    %v335 = vsel %vm271, %v333, %v334
    %v336 = vmul.f32 %v335, 0.0
    %338 = vrot.lane.b32.xlu0 %v335, 32
    %v339 = vpop.permute.xlu0 %338
    %v341 = vmul.f32 %v335, %v339
    %343 = vrot.lane.b32.xlu0 %v341, 32
    %v344 = vpop.permute.xlu0 %343
    %v346 = vadd.f32 %v336, %v344
    %v347 = vtanh.pop %v346
    %349 = vrot.lane.b32.xlu0 %v347, 32
    %v350 = vpop.permute.xlu0 %349
    %v352 = vmul.f32 %v335, %v350
    %v353 = vpack.c.bf16 %v352, %v352
    %355 = vrot.lane.b32.xlu0 %v353, 64
    %v356 = vpop.permute.xlu0 %355
    %v358 = vsel %vm226, %v356, 0
    %360 = vmatprep.subr.bf16.mxu0 0
    %361 = vmatpush1.bf16.msra.mxu0 %v280
    %362 = vmatprep.subr.bf16.mxu0 0
    %363 = vmatpush1.bf16.msra.mxu0 %v281
    %364 = vmatprep.subr.bf16.mxu0 0
    %365 = vmatpush1.bf16.msra.mxu0 0
    %366 = vmatprep.subr.bf16.mxu0 0
    %367 = vmatpush1.bf16.msra.mxu0 0
    %368 = vmatprep.subr.bf16.mxu0 0
    %369 = vmatpush1.bf16.msra.mxu0 0
    %370 = vmatprep.subr.bf16.mxu0 0
    %371 = vmatpush1.bf16.msra.mxu0 0
    %372 = vmatprep.subr.bf16.mxu0 0
    %373 = vmatpush1.bf16.msra.mxu0 0
    %374 = vmatprep.subr.bf16.mxu0 0
    %375 = vmatpush1.bf16.msra.mxu0 0
    %376 = vmatprep.subr.bf16.mxu0 0
    %377 = vmatpush1.bf16.msra.mxu0 0
    %378 = vmatprep.subr.bf16.mxu0 0
    %379 = vmatpush1.bf16.msra.mxu0 0
    %380 = vmatprep.subr.bf16.mxu0 0
    %381 = vmatpush1.bf16.msra.mxu0 0
    %382 = vmatprep.subr.bf16.mxu0 0
    %383 = vmatpush1.bf16.msra.mxu0 0
    %384 = vmatprep.subr.bf16.mxu0 0
    %385 = vmatpush1.bf16.msra.mxu0 0
    %386 = vmatprep.subr.bf16.mxu0 0
    %387 = vmatpush1.bf16.msra.mxu0 0
    %388 = vmatprep.subr.bf16.mxu0 0
    %389 = vmatpush1.bf16.msra.mxu0 0
    %390 = vmatprep.subr.bf16.mxu0 0
    %391 = vmatpush1.bf16.msra.mxu0 0
    %392 = vmatprep.mubr.bf16.mxu0 0
    %393 = vmatmul.mubr.bf16.gmra.mrb[0].mxu0 %v358
    %v394 = vpop.f32.mrb[0].mxu0
    %v395 = vadd.f32 0.0, %v394
    %v396 = vpop.f32.mrb[0].mxu0
    %v397 = vpop.f32.mrb[0].mxu0
    %v398 = vpop.f32.mrb[0].mxu0
    %399 = vdwg.mxu0
    %v401 = vrot.slane %v395, 6
    %v403 = vadd.f32 %v265, %v401
    %v404 = vxor.u32 %v403, 2147483648
    %v405 = vmul.f32 %v404, 1.442695
    %v406 = vpow.pop %v405
    %v407 = vadd.f32 %v406, 1.0
    %v408 = vrcp.pop %v407
    %v409 = vmul.f32 1.0, %v408
    %v410 = vtanh.pop %v403
    %v411 = vsel %vm271, %v409, %v410
    %v413 = vrot.slane %v346, 6
    %v415 = vmul.f32 %v411, %v413
    %417 = vrot.lane.b32.xlu0 %v411, 32
    %v418 = vpop.permute.xlu0 %417
    %v420 = vmul.f32 %v411, %v418
    %422 = vrot.lane.b32.xlu0 %v420, 32
    %v423 = vpop.permute.xlu0 %422
    %v425 = vadd.f32 %v415, %v423
    %v426 = vtanh.pop %v425
    %428 = vrot.lane.b32.xlu0 %v426, 32
    %v429 = vpop.permute.xlu0 %428
    %v431 = vmul.f32 %v411, %v429
    %v432 = vpack.c.bf16 %v431, %v431
    %v434 = vrot.slane %v432, 1
    %435 = vrot.lane.b32.xlu0 %v434, 64
    %v436 = vpop.permute.xlu0 %435
    %v438 = vsel %vm226, %v436, 0
    %440 = vmatprep.subr.bf16.mxu0 0
    %441 = vmatpush1.bf16.msra.mxu0 %v280
    %442 = vmatprep.subr.bf16.mxu0 0
    %443 = vmatpush1.bf16.msra.mxu0 %v281
    %444 = vmatprep.subr.bf16.mxu0 0
    %445 = vmatpush1.bf16.msra.mxu0 0
    %446 = vmatprep.subr.bf16.mxu0 0
    %447 = vmatpush1.bf16.msra.mxu0 0
    %448 = vmatprep.subr.bf16.mxu0 0
    %449 = vmatpush1.bf16.msra.mxu0 0
    %450 = vmatprep.subr.bf16.mxu0 0
    %451 = vmatpush1.bf16.msra.mxu0 0
    %452 = vmatprep.subr.bf16.mxu0 0
    %453 = vmatpush1.bf16.msra.mxu0 0
    %454 = vmatprep.subr.bf16.mxu0 0
    %455 = vmatpush1.bf16.msra.mxu0 0
    %456 = vmatprep.subr.bf16.mxu0 0
    %457 = vmatpush1.bf16.msra.mxu0 0
    %458 = vmatprep.subr.bf16.mxu0 0
    %459 = vmatpush1.bf16.msra.mxu0 0
    %460 = vmatprep.subr.bf16.mxu0 0
    %461 = vmatpush1.bf16.msra.mxu0 0
    %462 = vmatprep.subr.bf16.mxu0 0
    %463 = vmatpush1.bf16.msra.mxu0 0
    %464 = vmatprep.subr.bf16.mxu0 0
    %465 = vmatpush1.bf16.msra.mxu0 0
    %466 = vmatprep.subr.bf16.mxu0 0
    %467 = vmatpush1.bf16.msra.mxu0 0
    %468 = vmatprep.subr.bf16.mxu0 0
    %469 = vmatpush1.bf16.msra.mxu0 0
    %470 = vmatprep.subr.bf16.mxu0 0
    %471 = vmatpush1.bf16.msra.mxu0 0
    %472 = vmatprep.mubr.bf16.mxu0 0
    %473 = vmatmul.mubr.bf16.gmra.mrb[0].mxu0 %v438
    %v474 = vpop.f32.mrb[0].mxu0
    %v475 = vadd.f32 0.0, %v474
    %v476 = vpop.f32.mrb[0].mxu0
    %v477 = vpop.f32.mrb[0].mxu0
    %v478 = vpop.f32.mrb[0].mxu0
    %479 = vdwg.mxu0
    %v481 = vrot.slane %v475, 4
    %v483 = vadd.f32 %v265, %v481
    %v484 = vxor.u32 %v483, 2147483648
    %v485 = vmul.f32 %v484, 1.442695
    %v486 = vpow.pop %v485
    %v487 = vadd.f32 %v486, 1.0
    %v488 = vrcp.pop %v487
    %v489 = vmul.f32 1.0, %v488
    %v490 = vtanh.pop %v483
    %v491 = vsel %vm271, %v489, %v490
    %v493 = vrot.slane %v425, 6
    %v495 = vmul.f32 %v491, %v493
    %497 = vrot.lane.b32.xlu0 %v491, 32
    %v498 = vpop.permute.xlu0 %497
    %v500 = vmul.f32 %v491, %v498
    %502 = vrot.lane.b32.xlu0 %v500, 32
    %v503 = vpop.permute.xlu0 %502
    %v505 = vadd.f32 %v495, %v503
    %v506 = vtanh.pop %v505
    %508 = vrot.lane.b32.xlu0 %v506, 32
    %v509 = vpop.permute.xlu0 %508
    %v511 = vmul.f32 %v491, %v509
    %v512 = vpack.c.bf16 %v511, %v511
    %v514 = vrot.slane %v512, 2
    %515 = vrot.lane.b32.xlu0 %v514, 64
    %v516 = vpop.permute.xlu0 %515
    %v518 = vsel %vm226, %v516, 0
    %520 = vmatprep.subr.bf16.mxu0 0
    %521 = vmatpush1.bf16.msra.mxu0 %v280
    %522 = vmatprep.subr.bf16.mxu0 0
    %523 = vmatpush1.bf16.msra.mxu0 %v281
    %524 = vmatprep.subr.bf16.mxu0 0
    %525 = vmatpush1.bf16.msra.mxu0 0
    %526 = vmatprep.subr.bf16.mxu0 0
    %527 = vmatpush1.bf16.msra.mxu0 0
    %528 = vmatprep.subr.bf16.mxu0 0
    %529 = vmatpush1.bf16.msra.mxu0 0
    %530 = vmatprep.subr.bf16.mxu0 0
    %531 = vmatpush1.bf16.msra.mxu0 0
    %532 = vmatprep.subr.bf16.mxu0 0
    %533 = vmatpush1.bf16.msra.mxu0 0
    %534 = vmatprep.subr.bf16.mxu0 0
    %535 = vmatpush1.bf16.msra.mxu0 0
    %536 = vmatprep.subr.bf16.mxu0 0
    %537 = vmatpush1.bf16.msra.mxu0 0
    %538 = vmatprep.subr.bf16.mxu0 0
    %539 = vmatpush1.bf16.msra.mxu0 0
    %540 = vmatprep.subr.bf16.mxu0 0
    %541 = vmatpush1.bf16.msra.mxu0 0
    %542 = vmatprep.subr.bf16.mxu0 0
    %543 = vmatpush1.bf16.msra.mxu0 0
    %544 = vmatprep.subr.bf16.mxu0 0
    %545 = vmatpush1.bf16.msra.mxu0 0
    %546 = vmatprep.subr.bf16.mxu0 0
    %547 = vmatpush1.bf16.msra.mxu0 0
    %548 = vmatprep.subr.bf16.mxu0 0
    %549 = vmatpush1.bf16.msra.mxu0 0
    %550 = vmatprep.subr.bf16.mxu0 0
    %551 = vmatpush1.bf16.msra.mxu0 0
    %552 = vmatprep.mubr.bf16.mxu0 0
    %553 = vmatmul.mubr.bf16.gmra.mrb[0].mxu0 %v518
    %v554 = vpop.f32.mrb[0].mxu0
    %v555 = vadd.f32 0.0, %v554
    %v556 = vpop.f32.mrb[0].mxu0
    %v557 = vpop.f32.mrb[0].mxu0
    %v558 = vpop.f32.mrb[0].mxu0
    %559 = vdwg.mxu0
    %v561 = vrot.slane %v555, 2
    %v563 = vadd.f32 %v265, %v561
    %v564 = vxor.u32 %v563, 2147483648
    %v565 = vmul.f32 %v564, 1.442695
    %v566 = vpow.pop %v565
    %v567 = vadd.f32 %v566, 1.0
    %v568 = vrcp.pop %v567
    %v569 = vmul.f32 1.0, %v568
    %v570 = vtanh.pop %v563
    %v571 = vsel %vm271, %v569, %v570
    %v573 = vrot.slane %v505, 6
    %v575 = vmul.f32 %v571, %v573
    %577 = vrot.lane.b32.xlu0 %v571, 32
    %v578 = vpop.permute.xlu0 %577
    %v580 = vmul.f32 %v571, %v578
    %582 = vrot.lane.b32.xlu0 %v580, 32
    %v583 = vpop.permute.xlu0 %582
    %v585 = vadd.f32 %v575, %v583
    %v586 = vtanh.pop %v585
    %588 = vrot.lane.b32.xlu0 %v586, 32
    %v589 = vpop.permute.xlu0 %588
    %v591 = vmul.f32 %v571, %v589
    %v592 = vpack.c.bf16 %v591, %v591
    %v594 = vrot.slane %v592, 3
    %595 = vrot.lane.b32.xlu0 %v594, 64
    %v596 = vpop.permute.xlu0 %595
    %v598 = vsel %vm226, %v596, 0
    %600 = vmatprep.subr.bf16.mxu0 0
    %601 = vmatpush1.bf16.msra.mxu0 %v280
    %602 = vmatprep.subr.bf16.mxu0 0
    %603 = vmatpush1.bf16.msra.mxu0 %v281
    %604 = vmatprep.subr.bf16.mxu0 0
    %605 = vmatpush1.bf16.msra.mxu0 0
    %606 = vmatprep.subr.bf16.mxu0 0
    %607 = vmatpush1.bf16.msra.mxu0 0
    %608 = vmatprep.subr.bf16.mxu0 0
    %609 = vmatpush1.bf16.msra.mxu0 0
    %610 = vmatprep.subr.bf16.mxu0 0
    %611 = vmatpush1.bf16.msra.mxu0 0
    %612 = vmatprep.subr.bf16.mxu0 0
    %613 = vmatpush1.bf16.msra.mxu0 0
    %614 = vmatprep.subr.bf16.mxu0 0
    %615 = vmatpush1.bf16.msra.mxu0 0
    %616 = vmatprep.subr.bf16.mxu0 0
    %617 = vmatpush1.bf16.msra.mxu0 0
    %618 = vmatprep.subr.bf16.mxu0 0
    %619 = vmatpush1.bf16.msra.mxu0 0
    %620 = vmatprep.subr.bf16.mxu0 0
    %621 = vmatpush1.bf16.msra.mxu0 0
    %622 = vmatprep.subr.bf16.mxu0 0
    %623 = vmatpush1.bf16.msra.mxu0 0
    %624 = vmatprep.subr.bf16.mxu0 0
    %625 = vmatpush1.bf16.msra.mxu0 0
    %626 = vmatprep.subr.bf16.mxu0 0
    %627 = vmatpush1.bf16.msra.mxu0 0
    %628 = vmatprep.subr.bf16.mxu0 0
    %629 = vmatpush1.bf16.msra.mxu0 0
    %630 = vmatprep.subr.bf16.mxu0 0
    %631 = vmatpush1.bf16.msra.mxu0 0
    %632 = vmatprep.mubr.bf16.mxu0 0
    %633 = vmatmul.mubr.bf16.gmra.mrb[0].mxu0 %v598
    %v634 = vpop.f32.mrb[0].mxu0
    %v635 = vadd.f32 0.0, %v634
    %v636 = vpop.f32.mrb[0].mxu0
    %v637 = vpop.f32.mrb[0].mxu0
    %v638 = vpop.f32.mrb[0].mxu0
    %639 = vdwg.mxu0
    %v640 = vadd.f32 %v268, %v635
    %v641 = vxor.u32 %v640, 2147483648
    %v642 = vmul.f32 %v641, 1.442695
    %v643 = vpow.pop %v642
    %v644 = vadd.f32 %v643, 1.0
    %v645 = vrcp.pop %v644
    %v646 = vmul.f32 1.0, %v645
    %v647 = vtanh.pop %v640
    %v648 = vsel %vm271, %v646, %v647
    %v650 = vrot.slane %v585, 6
    %v652 = vmul.f32 %v648, %v650
    %654 = vrot.lane.b32.xlu0 %v648, 32
    %v655 = vpop.permute.xlu0 %654
    %v657 = vmul.f32 %v648, %v655
    %659 = vrot.lane.b32.xlu0 %v657, 32
    %v660 = vpop.permute.xlu0 %659
    %v662 = vadd.f32 %v652, %v660
    %v663 = vtanh.pop %v662
    %665 = vrot.lane.b32.xlu0 %v663, 32
    %v666 = vpop.permute.xlu0 %665
    %v668 = vmul.f32 %v648, %v666
    %v669 = vpack.c.bf16 %v668, %v668
    %671 = vrot.lane.b32.xlu0 %v669, 64
    %v672 = vpop.permute.xlu0 %671
    %v674 = vsel %vm226, %v672, 0
    %676 = vmatprep.subr.bf16.mxu0 0
    %677 = vmatpush1.bf16.msra.mxu0 %v280
    %678 = vmatprep.subr.bf16.mxu0 0
    %679 = vmatpush1.bf16.msra.mxu0 %v281
    %680 = vmatprep.subr.bf16.mxu0 0
    %681 = vmatpush1.bf16.msra.mxu0 0
    %682 = vmatprep.subr.bf16.mxu0 0
    %683 = vmatpush1.bf16.msra.mxu0 0
    %684 = vmatprep.subr.bf16.mxu0 0
    %685 = vmatpush1.bf16.msra.mxu0 0
    %686 = vmatprep.subr.bf16.mxu0 0
    %687 = vmatpush1.bf16.msra.mxu0 0
    %688 = vmatprep.subr.bf16.mxu0 0
    %689 = vmatpush1.bf16.msra.mxu0 0
    %690 = vmatprep.subr.bf16.mxu0 0
    %691 = vmatpush1.bf16.msra.mxu0 0
    %692 = vmatprep.subr.bf16.mxu0 0
    %693 = vmatpush1.bf16.msra.mxu0 0
    %694 = vmatprep.subr.bf16.mxu0 0
    %695 = vmatpush1.bf16.msra.mxu0 0
    %696 = vmatprep.subr.bf16.mxu0 0
    %697 = vmatpush1.bf16.msra.mxu0 0
    %698 = vmatprep.subr.bf16.mxu0 0
    %699 = vmatpush1.bf16.msra.mxu0 0
    %700 = vmatprep.subr.bf16.mxu0 0
    %701 = vmatpush1.bf16.msra.mxu0 0
    %702 = vmatprep.subr.bf16.mxu0 0
    %703 = vmatpush1.bf16.msra.mxu0 0
    %704 = vmatprep.subr.bf16.mxu0 0
    %705 = vmatpush1.bf16.msra.mxu0 0
    %706 = vmatprep.subr.bf16.mxu0 0
    %707 = vmatpush1.bf16.msra.mxu0 0
    %708 = vmatprep.mubr.bf16.mxu0 0
    %709 = vmatmul.mubr.bf16.gmra.mrb[0].mxu0 %v674
    %v710 = vpop.f32.mrb[0].mxu0
    %v711 = vadd.f32 0.0, %v710
    %v712 = vpop.f32.mrb[0].mxu0
    %v713 = vpop.f32.mrb[0].mxu0
    %v714 = vpop.f32.mrb[0].mxu0
    %715 = vdwg.mxu0
    %v717 = vrot.slane %v711, 6
    %v719 = vadd.f32 %v268, %v717
    %v720 = vxor.u32 %v719, 2147483648
    %v721 = vmul.f32 %v720, 1.442695
    %v722 = vpow.pop %v721
    %v723 = vadd.f32 %v722, 1.0
    %v724 = vrcp.pop %v723
    %v725 = vmul.f32 1.0, %v724
    %v726 = vtanh.pop %v719
    %v727 = vsel %vm271, %v725, %v726
    %v729 = vrot.slane %v662, 6
    %v731 = vmul.f32 %v727, %v729
    %733 = vrot.lane.b32.xlu0 %v727, 32
    %v734 = vpop.permute.xlu0 %733
    %v736 = vmul.f32 %v727, %v734
    %738 = vrot.lane.b32.xlu0 %v736, 32
    %v739 = vpop.permute.xlu0 %738
    %v741 = vadd.f32 %v731, %v739
    %v742 = vtanh.pop %v741
    %744 = vrot.lane.b32.xlu0 %v742, 32
    %v745 = vpop.permute.xlu0 %744
    %v747 = vmul.f32 %v727, %v745
    %v748 = vpack.c.bf16 %v747, %v747
    %v750 = vrot.slane %v748, 1
    %751 = vrot.lane.b32.xlu0 %v750, 64
    %v752 = vpop.permute.xlu0 %751
    %v754 = vsel %vm226, %v752, 0
    %756 = vmatprep.subr.bf16.mxu0 0
    %757 = vmatpush1.bf16.msra.mxu0 %v280
    %758 = vmatprep.subr.bf16.mxu0 0
    %759 = vmatpush1.bf16.msra.mxu0 %v281
    %760 = vmatprep.subr.bf16.mxu0 0
    %761 = vmatpush1.bf16.msra.mxu0 0
    %762 = vmatprep.subr.bf16.mxu0 0
    %763 = vmatpush1.bf16.msra.mxu0 0
    %764 = vmatprep.subr.bf16.mxu0 0
    %765 = vmatpush1.bf16.msra.mxu0 0
    %766 = vmatprep.subr.bf16.mxu0 0
    %767 = vmatpush1.bf16.msra.mxu0 0
    %768 = vmatprep.subr.bf16.mxu0 0
    %769 = vmatpush1.bf16.msra.mxu0 0
    %770 = vmatprep.subr.bf16.mxu0 0
    %771 = vmatpush1.bf16.msra.mxu0 0
    %772 = vmatprep.subr.bf16.mxu0 0
    %773 = vmatpush1.bf16.msra.mxu0 0
    %774 = vmatprep.subr.bf16.mxu0 0
    %775 = vmatpush1.bf16.msra.mxu0 0
    %776 = vmatprep.subr.bf16.mxu0 0
    %777 = vmatpush1.bf16.msra.mxu0 0
    %778 = vmatprep.subr.bf16.mxu0 0
    %779 = vmatpush1.bf16.msra.mxu0 0
    %780 = vmatprep.subr.bf16.mxu0 0
    %781 = vmatpush1.bf16.msra.mxu0 0
    %782 = vmatprep.subr.bf16.mxu0 0
    %783 = vmatpush1.bf16.msra.mxu0 0
    %784 = vmatprep.subr.bf16.mxu0 0
    %785 = vmatpush1.bf16.msra.mxu0 0
    %786 = vmatprep.subr.bf16.mxu0 0
    %787 = vmatpush1.bf16.msra.mxu0 0
    %788 = vmatprep.mubr.bf16.mxu0 0
    %789 = vmatmul.mubr.bf16.gmra.mrb[0].mxu0 %v754
    %v790 = vpop.f32.mrb[0].mxu0
    %v791 = vadd.f32 0.0, %v790
    %v792 = vpop.f32.mrb[0].mxu0
    %v793 = vpop.f32.mrb[0].mxu0
    %v794 = vpop.f32.mrb[0].mxu0
    %795 = vdwg.mxu0
    %v797 = vrot.slane %v791, 4
    %v799 = vadd.f32 %v268, %v797
    %v800 = vxor.u32 %v799, 2147483648
    %v801 = vmul.f32 %v800, 1.442695
    %v802 = vpow.pop %v801
    %v803 = vadd.f32 %v802, 1.0
    %v804 = vrcp.pop %v803
    %v805 = vmul.f32 1.0, %v804
    %v806 = vtanh.pop %v799
    %v807 = vsel %vm271, %v805, %v806
    %v809 = vrot.slane %v741, 6
    %v811 = vmul.f32 %v807, %v809
    %813 = vrot.lane.b32.xlu0 %v807, 32
    %v814 = vpop.permute.xlu0 %813
    %v816 = vmul.f32 %v807, %v814
    %818 = vrot.lane.b32.xlu0 %v816, 32
    %v819 = vpop.permute.xlu0 %818
    %v821 = vadd.f32 %v811, %v819
    %v822 = vtanh.pop %v821
    %824 = vrot.lane.b32.xlu0 %v822, 32
    %v825 = vpop.permute.xlu0 %824
    %v827 = vmul.f32 %v807, %v825
    %v828 = vpack.c.bf16 %v827, %v827
    %v830 = vrot.slane %v828, 2
    %831 = vrot.lane.b32.xlu0 %v830, 64
    %v832 = vpop.permute.xlu0 %831
    %v834 = vsel %vm226, %v832, 0
    %836 = vmatprep.subr.bf16.mxu0 0
    %837 = vmatpush1.bf16.msra.mxu0 %v280
    %838 = vmatprep.subr.bf16.mxu0 0
    %839 = vmatpush1.bf16.msra.mxu0 %v281
    %840 = vmatprep.subr.bf16.mxu0 0
    %841 = vmatpush1.bf16.msra.mxu0 0
    %842 = vmatprep.subr.bf16.mxu0 0
    %843 = vmatpush1.bf16.msra.mxu0 0
    %844 = vmatprep.subr.bf16.mxu0 0
    %845 = vmatpush1.bf16.msra.mxu0 0
    %846 = vmatprep.subr.bf16.mxu0 0
    %847 = vmatpush1.bf16.msra.mxu0 0
    %848 = vmatprep.subr.bf16.mxu0 0
    %849 = vmatpush1.bf16.msra.mxu0 0
    %850 = vmatprep.subr.bf16.mxu0 0
    %851 = vmatpush1.bf16.msra.mxu0 0
    %852 = vmatprep.subr.bf16.mxu0 0
    %853 = vmatpush1.bf16.msra.mxu0 0
    %854 = vmatprep.subr.bf16.mxu0 0
    %855 = vmatpush1.bf16.msra.mxu0 0
    %856 = vmatprep.subr.bf16.mxu0 0
    %857 = vmatpush1.bf16.msra.mxu0 0
    %858 = vmatprep.subr.bf16.mxu0 0
    %859 = vmatpush1.bf16.msra.mxu0 0
    %860 = vmatprep.subr.bf16.mxu0 0
    %861 = vmatpush1.bf16.msra.mxu0 0
    %862 = vmatprep.subr.bf16.mxu0 0
    %863 = vmatpush1.bf16.msra.mxu0 0
    %864 = vmatprep.subr.bf16.mxu0 0
    %865 = vmatpush1.bf16.msra.mxu0 0
    %866 = vmatprep.subr.bf16.mxu0 0
    %867 = vmatpush1.bf16.msra.mxu0 0
    %868 = vmatprep.mubr.bf16.mxu0 0
    %869 = vmatmul.mubr.bf16.gmra.mrb[0].mxu0 %v834
    %v870 = vpop.f32.mrb[0].mxu0
    %v871 = vadd.f32 0.0, %v870
    %v872 = vpop.f32.mrb[0].mxu0
    %v873 = vpop.f32.mrb[0].mxu0
    %v874 = vpop.f32.mrb[0].mxu0
    %875 = vdwg.mxu0
    %v877 = vrot.slane %v871, 2
    %v879 = vadd.f32 %v268, %v877
    %v880 = vxor.u32 %v879, 2147483648
    %v881 = vmul.f32 %v880, 1.442695
    %v882 = vpow.pop %v881
    %v883 = vadd.f32 %v882, 1.0
    %v884 = vrcp.pop %v883
    %v885 = vmul.f32 1.0, %v884
    %v886 = vtanh.pop %v879
    %v887 = vsel %vm271, %v885, %v886
    %v889 = vrot.slane %v821, 6
    %v891 = vmul.f32 %v887, %v889
    %893 = vrot.lane.b32.xlu0 %v887, 32
    %v894 = vpop.permute.xlu0 %893
    %v896 = vmul.f32 %v887, %v894
    %898 = vrot.lane.b32.xlu0 %v896, 32
    %v899 = vpop.permute.xlu0 %898
    %v901 = vadd.f32 %v891, %v899
    %v902 = vtanh.pop %v901
    %904 = vrot.lane.b32.xlu0 %v902, 32
    %v905 = vpop.permute.xlu0 %904
    %v907 = vmul.f32 %v887, %v905
    %vm908 = vcmask 1041408
    %v909 = vsel %vm908, %v352, %v431
    %vm910 = vcmask 1043456
    %v911 = vsel %vm910, %v909, %v511
    %vm912 = vcmask 1045504
    %v913 = vsel %vm912, %v911, %v591
    %v914 = vsel %vm908, %v668, %v747
    %v915 = vsel %vm910, %v914, %v827
    %v916 = vsel %vm912, %v915, %v907
    %v917 = vld [vmem:[#allocation2 + $0x20] sm:$0xf]
    %v918 = vld [vmem:[#allocation2 + $0x24] sm:$0xf]
    %v919 = vld [vmem:[#allocation2 + $0x28] sm:$0xf]
    %v920 = vld [vmem:[#allocation2 + $0x2c] sm:$0xf]
    %v921 = vld [vmem:[#allocation5 + $0x1] sm:$0x1]
    %v922 = vpack.c.bf16 %v916, %v913
    %v923 = vlaneseq
    %v924 = vshrl.u32 %v923, 7
    %v925 = vsub.s32 0, %v924
    %v926 = vrot.slane %v921, %v925
    %928 = vrot.lane.b32.xlu0 %v922, 64
    %v929 = vpop.permute.xlu0 %928
    %v934 = vunpack.c.l.b16 %v917
    %v935 = vunpack.c.l.b16 %v918
    %v936 = vunpack.c.l.b16 %v919
    %v937 = vunpack.c.l.b16 %v920
    %v938 = vpack.c.b16 %v935, %v934
    %v939 = vpack.c.b16 %v937, %v936
    %v943 = vsel %vm226, %v929, 0
    %945 = vmatprep.subr.bf16.mxu0 0
    %946 = vmatpush1.bf16.msra.mxu0 %v938
    %947 = vmatprep.subr.bf16.mxu0 0
    %948 = vmatpush1.bf16.msra.mxu0 %v939
    %949 = vmatprep.subr.bf16.mxu0 0
    %950 = vmatpush1.bf16.msra.mxu0 0
    %951 = vmatprep.subr.bf16.mxu0 0
    %952 = vmatpush1.bf16.msra.mxu0 0
    %953 = vmatprep.subr.bf16.mxu0 0
    %954 = vmatpush1.bf16.msra.mxu0 0
    %955 = vmatprep.subr.bf16.mxu0 0
    %956 = vmatpush1.bf16.msra.mxu0 0
    %957 = vmatprep.subr.bf16.mxu0 0
    %958 = vmatpush1.bf16.msra.mxu0 0
    %959 = vmatprep.subr.bf16.mxu0 0
    %960 = vmatpush1.bf16.msra.mxu0 0
    %961 = vmatprep.subr.bf16.mxu0 0
    %962 = vmatpush1.bf16.msra.mxu0 0
    %963 = vmatprep.subr.bf16.mxu0 0
    %964 = vmatpush1.bf16.msra.mxu0 0
    %965 = vmatprep.subr.bf16.mxu0 0
    %966 = vmatpush1.bf16.msra.mxu0 0
    %967 = vmatprep.subr.bf16.mxu0 0
    %968 = vmatpush1.bf16.msra.mxu0 0
    %969 = vmatprep.subr.bf16.mxu0 0
    %970 = vmatpush1.bf16.msra.mxu0 0
    %971 = vmatprep.subr.bf16.mxu0 0
    %972 = vmatpush1.bf16.msra.mxu0 0
    %973 = vmatprep.subr.bf16.mxu0 0
    %974 = vmatpush1.bf16.msra.mxu0 0
    %975 = vmatprep.subr.bf16.mxu0 0
    %976 = vmatpush1.bf16.msra.mxu0 0
    %977 = vmatprep.mubr.bf16.mxu0 0
    %978 = vmatmul.mubr.bf16.gmra.mrb[0].mxu0 %v943
    %v979 = vpop.f32.mrb[0].mxu0
    %v980 = vadd.f32 %v926, %v979
    %v981 = vpop.f32.mrb[0].mxu0
    %v982 = vpop.f32.mrb[0].mxu0
    %v983 = vadd.f32 %v926, %v982
    %v984 = vpop.f32.mrb[0].mxu0
    %985 = vdwg.mxu0
    %v986 = vpack.c.bf16 %v983, %v980
    %988 = vrot.lane.b32.xlu0 %v986, 96
    %v989 = vpop.permute.xlu0 %988
    %v991 = vsel %vm226, %v986, 0
    %v994 = vsel %vm226, %v989, 0
    %996 = vmatprep.subr.bf16.mxu0 0
    %997 = vmatpush1.bf16.xpose.msra.mxu0 %v994
    %998 = vmatprep.subr.bf16.mxu0 0
    %999 = vmatpush1.bf16.xpose.msra.mxu0 0
    %1000 = vmatprep.subr.bf16.mxu0 0
    %1001 = vmatpush1.bf16.xpose.msra.mxu0 0
    %1002 = vmatprep.subr.bf16.mxu0 0
    %1003 = vmatpush1.bf16.xpose.msra.mxu0 0
    %1004 = vmatprep.subr.bf16.mxu0 0
    %1005 = vmatpush1.bf16.xpose.msra.mxu0 0
    %1006 = vmatprep.subr.bf16.mxu0 0
    %1007 = vmatpush1.bf16.xpose.msra.mxu0 0
    %1008 = vmatprep.subr.bf16.mxu0 0
    %1009 = vmatpush1.bf16.xpose.msra.mxu0 0
    %1010 = vmatprep.subr.bf16.mxu0 0
    %1011 = vmatpush1.bf16.xpose.msra.mxu0 0
    %1012 = vmatprep.subr.bf16.mxu0 0
    %1013 = vmatpush1.bf16.xpose.msra.mxu0 0
    %1014 = vmatprep.subr.bf16.mxu0 0
    %1015 = vmatpush1.bf16.xpose.msra.mxu0 0
    %1016 = vmatprep.subr.bf16.mxu0 0
    %1017 = vmatpush1.bf16.xpose.msra.mxu0 0
    %1018 = vmatprep.subr.bf16.mxu0 0
    %1019 = vmatpush1.bf16.xpose.msra.mxu0 0
    %1020 = vmatprep.subr.bf16.mxu0 0
    %1021 = vmatpush1.bf16.xpose.msra.mxu0 0
    %1022 = vmatprep.subr.bf16.mxu0 0
    %1023 = vmatpush1.bf16.xpose.msra.mxu0 0
    %1024 = vmatprep.subr.bf16.mxu0 0
    %1025 = vmatpush1.bf16.xpose.msra.mxu0 0
    %1026 = vmatprep.subr.bf16.mxu0 0
    %1027 = vmatpush1.bf16.xpose.msra.mxu0 0
    %1028 = vmatprep.mubr.bf16.mxu0 0
    %1029 = vmatmul.mubr.bf16.gmra.mrb[0].mxu0 %v991
    %v1030 = vpop.f32.mrb[0].mxu0
    %v1031 = vadd.f32 0.0, %v1030
    %v1032 = vpop.f32.mrb[0].mxu0
    %v1033 = vpop.f32.mrb[0].mxu0
    %v1034 = vadd.f32 0.0, %v1033
    %v1035 = vpop.f32.mrb[0].mxu0
    %1036 = vdwg.mxu0
    %v1037 = vmul.f32 %v1031, 0.17677669
    %v1038 = vmul.f32 %v1034, 0.17677669
    %v1039 = vadd.f32 %v1037, %v198
    %v1040 = vadd.f32 %v1038, %v199
    %v1041 = vsel %vm66, %v1039, -inf
    %1042 = vmax.xlane.f32.xlu0 %v1041
    %v1043 = vpop.xlane.xlu0 %1042
    %v1044 = vsel %vm66, %v1040, -inf
    %1045 = vmax.xlane.f32.xlu0 %v1044
    %v1046 = vpop.xlane.xlu0 %1045
    %v1047 = vsub.f32 %v1039, %v1043
    %v1048 = vsub.f32 %v1040, %v1046
    %v1049 = vmul.f32 %v1047, 1.442695
    %v1050 = vpow.pop %v1049
    %v1051 = vmul.f32 %v1048, 1.442695
    %v1052 = vpow.pop %v1051
    %v1053 = vsel %vm66, %v1050, 0.0
    %1054 = vadd.xlane.f32.xlu0 %v1053
    %v1055 = vpop.xlane.xlu0 %1054
    %v1056 = vsel %vm66, %v1052, 0.0
    %1057 = vadd.xlane.f32.xlu0 %v1056
    %v1058 = vpop.xlane.xlu0 %1057
    %v1059 = vrcp.pop %v1055
    %v1060 = vrcp.pop %v1058
    %v1061 = vmul.f32 %v1050, %v1059
    %v1062 = vmul.f32 %v1052, %v1060
    %v1063 = vpack.c.bf16 %v1062, %v1061
    %1064 = vrot.lane.b32.xlu0 %v986, 64
    %v1065 = vpop.permute.xlu0 %1064
    %v1068 = vsel %vm66, %v1063, 0
    %1070 = vmatprep.subr.bf16.mxu0 0
    %1071 = vmatpush1.bf16.msra.mxu0 %v1065
    %1072 = vmatprep.subr.bf16.mxu0 0
    %1073 = vmatpush1.bf16.msra.mxu0 0
    %1074 = vmatprep.subr.bf16.mxu0 0
    %1075 = vmatpush1.bf16.msra.mxu0 0
    %1076 = vmatprep.subr.bf16.mxu0 0
    %1077 = vmatpush1.bf16.msra.mxu0 0
    %1078 = vmatprep.subr.bf16.mxu0 0
    %1079 = vmatpush1.bf16.msra.mxu0 0
    %1080 = vmatprep.subr.bf16.mxu0 0
    %1081 = vmatpush1.bf16.msra.mxu0 0
    %1082 = vmatprep.subr.bf16.mxu0 0
    %1083 = vmatpush1.bf16.msra.mxu0 0
    %1084 = vmatprep.subr.bf16.mxu0 0
    %1085 = vmatpush1.bf16.msra.mxu0 0
    %1086 = vmatprep.subr.bf16.mxu0 0
    %1087 = vmatpush1.bf16.msra.mxu0 0
    %1088 = vmatprep.subr.bf16.mxu0 0
    %1089 = vmatpush1.bf16.msra.mxu0 0
    %1090 = vmatprep.subr.bf16.mxu0 0
    %1091 = vmatpush1.bf16.msra.mxu0 0
    %1092 = vmatprep.subr.bf16.mxu0 0
    %1093 = vmatpush1.bf16.msra.mxu0 0
    %1094 = vmatprep.subr.bf16.mxu0 0
    %1095 = vmatpush1.bf16.msra.mxu0 0
    %1096 = vmatprep.subr.bf16.mxu0 0
    %1097 = vmatpush1.bf16.msra.mxu0 0
    %1098 = vmatprep.subr.bf16.mxu0 0
    %1099 = vmatpush1.bf16.msra.mxu0 0
    %1100 = vmatprep.subr.bf16.mxu0 0
    %1101 = vmatpush1.bf16.msra.mxu0 0
    %1102 = vmatprep.mubr.bf16.mxu0 0
    %1103 = vmatmul.mubr.bf16.gmra.mrb[0].mxu0 %v1068
    %v1104 = vpop.f32.mrb[0].mxu0
    %v1105 = vadd.f32 0.0, %v1104
    %v1106 = vpop.f32.mrb[0].mxu0
    %v1107 = vpop.f32.mrb[0].mxu0
    %v1108 = vadd.f32 0.0, %v1107
    %v1109 = vpop.f32.mrb[0].mxu0
    %1110 = vdwg.mxu0
    %v1111 = vld [vmem:[#allocation2 + $0x50] sm:$0xf]
    %v1112 = vld [vmem:[#allocation2 + $0x54] sm:$0xf]
    %v1113 = vld [vmem:[#allocation2 + $0x58] sm:$0xf]
    %v1114 = vld [vmem:[#allocation2 + $0x5c] sm:$0xf]
    %v1115 = vld [vmem:[#allocation5 + $0x4] sm:$0x1]
    %v1116 = vld [vmem:[#allocation5 + $0x7] sm:$0x1]
    %v1117 = vld [vmem:[#allocation5 + $0xa] sm:$0x1]
    %1120 = vrot.lane.b32.xlu0 %v1105, 64
    %v1121 = vpop.permute.xlu0 %1120
    %1122 = vrot.lane.b32.xlu0 %v1108, 64
    %v1123 = vpop.permute.xlu0 %1122
    %v1126 = vadd.f32 %v913, %v1121
    %v1127 = vadd.f32 %v916, %v1123
    %v1128 = vpack.c.bf16 %v1127, %v1126
    %v1129 = vlaneseq
    %v1130 = vshrl.u32 %v1129, 7
    %v1131 = vsub.s32 0, %v1130
    %v1132 = vrot.slane %v1115, %v1131
    %1134 = vrot.lane.b32.xlu0 %v1128, 64
    %v1135 = vpop.permute.xlu0 %1134
    %v1140 = vunpack.c.l.b16 %v1111
    %v1141 = vunpack.c.l.b16 %v1112
    %v1142 = vunpack.c.l.b16 %v1113
    %v1143 = vunpack.c.l.b16 %v1114
    %v1144 = vpack.c.b16 %v1141, %v1140
    %v1145 = vpack.c.b16 %v1143, %v1142
    %v1149 = vsel %vm226, %v1135, 0
    %1151 = vmatprep.subr.bf16.mxu0 0
    %1152 = vmatpush1.bf16.msra.mxu0 %v1144
    %1153 = vmatprep.subr.bf16.mxu0 0
    %1154 = vmatpush1.bf16.msra.mxu0 %v1145
    %1155 = vmatprep.subr.bf16.mxu0 0
    %1156 = vmatpush1.bf16.msra.mxu0 0
    %1157 = vmatprep.subr.bf16.mxu0 0
    %1158 = vmatpush1.bf16.msra.mxu0 0
    %1159 = vmatprep.subr.bf16.mxu0 0
    %1160 = vmatpush1.bf16.msra.mxu0 0
    %1161 = vmatprep.subr.bf16.mxu0 0
    %1162 = vmatpush1.bf16.msra.mxu0 0
    %1163 = vmatprep.subr.bf16.mxu0 0
    %1164 = vmatpush1.bf16.msra.mxu0 0
    %1165 = vmatprep.subr.bf16.mxu0 0
    %1166 = vmatpush1.bf16.msra.mxu0 0
    %1167 = vmatprep.subr.bf16.mxu0 0
    %1168 = vmatpush1.bf16.msra.mxu0 0
    %1169 = vmatprep.subr.bf16.mxu0 0
    %1170 = vmatpush1.bf16.msra.mxu0 0
    %1171 = vmatprep.subr.bf16.mxu0 0
    %1172 = vmatpush1.bf16.msra.mxu0 0
    %1173 = vmatprep.subr.bf16.mxu0 0
    %1174 = vmatpush1.bf16.msra.mxu0 0
    %1175 = vmatprep.subr.bf16.mxu0 0
    %1176 = vmatpush1.bf16.msra.mxu0 0
    %1177 = vmatprep.subr.bf16.mxu0 0
    %1178 = vmatpush1.bf16.msra.mxu0 0
    %1179 = vmatprep.subr.bf16.mxu0 0
    %1180 = vmatpush1.bf16.msra.mxu0 0
    %1181 = vmatprep.subr.bf16.mxu0 0
    %1182 = vmatpush1.bf16.msra.mxu0 0
    %1183 = vmatprep.mubr.bf16.mxu0 0
    %1184 = vmatmul.mubr.bf16.gmra.mrb[0].mxu0 %v1149
    %v1185 = vpop.f32.mrb[0].mxu0
    %v1186 = vadd.f32 %v1132, %v1185
    %v1187 = vpop.f32.mrb[0].mxu0
    %v1188 = vpop.f32.mrb[0].mxu0
    %v1189 = vadd.f32 %v1132, %v1188
    %v1190 = vpop.f32.mrb[0].mxu0
    %1191 = vdwg.mxu0
    %v1192 = vsel %vm226, %v1186, 0.0
    %1193 = vadd.xlane.f32.xlu0 %v1192
    %v1194 = vpop.xlane.xlu0 %1193
    %v1195 = vsel %vm226, %v1189, 0.0
    %1196 = vadd.xlane.f32.xlu0 %v1195
    %v1197 = vpop.xlane.xlu0 %1196
    %v1198 = vrcp.pop 32.0
    %v1199 = vmul.f32 %v1194, %v1198
    %v1200 = vmul.f32 %v1197, %v1198
    %v1201 = vsub.f32 %v1186, %v1199
    %v1202 = vsub.f32 %v1189, %v1200
    %v1203 = vmul.f32 %v1201, %v1201
    %v1204 = vmul.f32 %v1202, %v1202
    %v1205 = vsel %vm226, %v1203, 0.0
    %1206 = vadd.xlane.f32.xlu0 %v1205
    %v1207 = vpop.xlane.xlu0 %1206
    %v1208 = vsel %vm226, %v1204, 0.0
    %1209 = vadd.xlane.f32.xlu0 %v1208
    %v1210 = vpop.xlane.xlu0 %1209
    %v1211 = vmul.f32 %v1207, %v1198
    %v1212 = vmul.f32 %v1210, %v1198
    %v1213 = vadd.f32 %v1211, 1e-05
    %v1214 = vadd.f32 %v1212, 1e-05
    %v1215 = vrsqrt.pop %v1213
    %v1216 = vrsqrt.pop %v1214
    %v1217 = vmul.f32 %v1201, %v1215
    %v1218 = vmul.f32 %v1202, %v1216
    %v1219 = vlaneseq
    %v1220 = vshrl.u32 %v1219, 7
    %v1221 = vsub.s32 0, %v1220
    %v1222 = vrot.slane %v1116, %v1221
    %v1223 = vmul.f32 %v1217, %v1222
    %v1224 = vmul.f32 %v1218, %v1222
    %v1225 = vlaneseq
    %v1226 = vshrl.u32 %v1225, 7
    %v1227 = vsub.s32 0, %v1226
    %v1228 = vrot.slane %v1117, %v1227
    %v1229 = vadd.f32 %v1223, %v1228
    %v1230 = vadd.f32 %v1224, %v1228
    %v1231 = vld [vmem:[#allocation2 + $0x30] sm:$0xf]
    %v1232 = vld [vmem:[#allocation2 + $0x34] sm:$0xf]
    %v1233 = vld [vmem:[#allocation2 + $0x38] sm:$0xf]
    %v1234 = vld [vmem:[#allocation2 + $0x3c] sm:$0xf]
    %v1235 = vld [vmem:[#allocation5 + $0x2] sm:$0x1]
    %v1236 = vpack.c.bf16 %v1230, %v1229
    %v1237 = vlaneseq
    %v1238 = vshrl.u32 %v1237, 7
    %v1239 = vsub.s32 0, %v1238
    %v1240 = vrot.slane %v1235, %v1239
    %v1245 = vunpack.c.l.b16 %v1231
    %v1246 = vunpack.c.l.b16 %v1232
    %v1247 = vunpack.c.l.b16 %v1233
    %v1248 = vunpack.c.l.b16 %v1234
    %v1249 = vpack.c.b16 %v1246, %v1245
    %v1250 = vpack.c.b16 %v1248, %v1247
    %v1254 = vsel %vm226, %v1236, 0
    %1256 = vmatprep.subr.bf16.mxu0 0
    %1257 = vmatpush1.bf16.msra.mxu0 %v1249
    %1258 = vmatprep.subr.bf16.mxu0 0
    %1259 = vmatpush1.bf16.msra.mxu0 %v1250
    %1260 = vmatprep.subr.bf16.mxu0 0
    %1261 = vmatpush1.bf16.msra.mxu0 0
    %1262 = vmatprep.subr.bf16.mxu0 0
    %1263 = vmatpush1.bf16.msra.mxu0 0
    %1264 = vmatprep.subr.bf16.mxu0 0
    %1265 = vmatpush1.bf16.msra.mxu0 0
    %1266 = vmatprep.subr.bf16.mxu0 0
    %1267 = vmatpush1.bf16.msra.mxu0 0
    %1268 = vmatprep.subr.bf16.mxu0 0
    %1269 = vmatpush1.bf16.msra.mxu0 0
    %1270 = vmatprep.subr.bf16.mxu0 0
    %1271 = vmatpush1.bf16.msra.mxu0 0
    %1272 = vmatprep.subr.bf16.mxu0 0
    %1273 = vmatpush1.bf16.msra.mxu0 0
    %1274 = vmatprep.subr.bf16.mxu0 0
    %1275 = vmatpush1.bf16.msra.mxu0 0
    %1276 = vmatprep.subr.bf16.mxu0 0
    %1277 = vmatpush1.bf16.msra.mxu0 0
    %1278 = vmatprep.subr.bf16.mxu0 0
    %1279 = vmatpush1.bf16.msra.mxu0 0
    %1280 = vmatprep.subr.bf16.mxu0 0
    %1281 = vmatpush1.bf16.msra.mxu0 0
    %1282 = vmatprep.subr.bf16.mxu0 0
    %1283 = vmatpush1.bf16.msra.mxu0 0
    %1284 = vmatprep.subr.bf16.mxu0 0
    %1285 = vmatpush1.bf16.msra.mxu0 0
    %1286 = vmatprep.subr.bf16.mxu0 0
    %1287 = vmatpush1.bf16.msra.mxu0 0
    %1288 = vmatprep.mubr.bf16.mxu0 0
    %1289 = vmatmul.mubr.bf16.gmra.mrb[0].mxu0 %v1254
    %v1290 = vpop.f32.mrb[0].mxu0
    %v1291 = vadd.f32 %v1240, %v1290
    %v1292 = vpop.f32.mrb[0].mxu0
    %v1293 = vpop.f32.mrb[0].mxu0
    %v1294 = vadd.f32 %v1240, %v1293
    %v1295 = vpop.f32.mrb[0].mxu0
    %1296 = vdwg.mxu0
    %v1297 = vpack.c.bf16 %v1294, %v1291
    %1299 = vrot.lane.b32.xlu0 %v1297, 96
    %v1300 = vpop.permute.xlu0 %1299
    %v1302 = vsel %vm226, %v1297, 0
    %v1305 = vsel %vm226, %v1300, 0
    %1307 = vmatprep.subr.bf16.mxu0 0
    %1308 = vmatpush1.bf16.xpose.msra.mxu0 %v1305
    %1309 = vmatprep.subr.bf16.mxu0 0
    %1310 = vmatpush1.bf16.xpose.msra.mxu0 0
    %1311 = vmatprep.subr.bf16.mxu0 0
    %1312 = vmatpush1.bf16.xpose.msra.mxu0 0
    %1313 = vmatprep.subr.bf16.mxu0 0
    %1314 = vmatpush1.bf16.xpose.msra.mxu0 0
    %1315 = vmatprep.subr.bf16.mxu0 0
    %1316 = vmatpush1.bf16.xpose.msra.mxu0 0
    %1317 = vmatprep.subr.bf16.mxu0 0
    %1318 = vmatpush1.bf16.xpose.msra.mxu0 0
    %1319 = vmatprep.subr.bf16.mxu0 0
    %1320 = vmatpush1.bf16.xpose.msra.mxu0 0
    %1321 = vmatprep.subr.bf16.mxu0 0
    %1322 = vmatpush1.bf16.xpose.msra.mxu0 0
    %1323 = vmatprep.subr.bf16.mxu0 0
    %1324 = vmatpush1.bf16.xpose.msra.mxu0 0
    %1325 = vmatprep.subr.bf16.mxu0 0
    %1326 = vmatpush1.bf16.xpose.msra.mxu0 0
    %1327 = vmatprep.subr.bf16.mxu0 0
    %1328 = vmatpush1.bf16.xpose.msra.mxu0 0
    %1329 = vmatprep.subr.bf16.mxu0 0
    %1330 = vmatpush1.bf16.xpose.msra.mxu0 0
    %1331 = vmatprep.subr.bf16.mxu0 0
    %1332 = vmatpush1.bf16.xpose.msra.mxu0 0
    %1333 = vmatprep.subr.bf16.mxu0 0
    %1334 = vmatpush1.bf16.xpose.msra.mxu0 0
    %1335 = vmatprep.subr.bf16.mxu0 0
    %1336 = vmatpush1.bf16.xpose.msra.mxu0 0
    %1337 = vmatprep.subr.bf16.mxu0 0
    %1338 = vmatpush1.bf16.xpose.msra.mxu0 0
    %1339 = vmatprep.mubr.bf16.mxu0 0
    %1340 = vmatmul.mubr.bf16.gmra.mrb[0].mxu0 %v1302
    %v1341 = vpop.f32.mrb[0].mxu0
    %v1342 = vadd.f32 0.0, %v1341
    %v1343 = vpop.f32.mrb[0].mxu0
    %v1344 = vpop.f32.mrb[0].mxu0
    %v1345 = vadd.f32 0.0, %v1344
    %v1346 = vpop.f32.mrb[0].mxu0
    %1347 = vdwg.mxu0
    %v1348 = vmul.f32 %v1342, 0.17677669
    %v1349 = vmul.f32 %v1345, 0.17677669
    %v1350 = vadd.f32 %v1348, %v198
    %v1351 = vadd.f32 %v1349, %v199
    %v1352 = vsel %vm66, %v1350, -inf
    %1353 = vmax.xlane.f32.xlu0 %v1352
    %v1354 = vpop.xlane.xlu0 %1353
    %v1355 = vsel %vm66, %v1351, -inf
    %1356 = vmax.xlane.f32.xlu0 %v1355
    %v1357 = vpop.xlane.xlu0 %1356
    %v1358 = vsub.f32 %v1350, %v1354
    %v1359 = vsub.f32 %v1351, %v1357
    %v1360 = vmul.f32 %v1358, 1.442695
    %v1361 = vpow.pop %v1360
    %v1362 = vmul.f32 %v1359, 1.442695
    %v1363 = vpow.pop %v1362
    %v1364 = vsel %vm66, %v1361, 0.0
    %1365 = vadd.xlane.f32.xlu0 %v1364
    %v1366 = vpop.xlane.xlu0 %1365
    %v1367 = vsel %vm66, %v1363, 0.0
    %1368 = vadd.xlane.f32.xlu0 %v1367
    %v1369 = vpop.xlane.xlu0 %1368
    %v1370 = vrcp.pop %v1366
    %v1371 = vrcp.pop %v1369
    %v1372 = vmul.f32 %v1361, %v1370
    %v1373 = vmul.f32 %v1363, %v1371
    %v1374 = vpack.c.bf16 %v1373, %v1372
    %1375 = vrot.lane.b32.xlu0 %v1297, 64
    %v1376 = vpop.permute.xlu0 %1375
    %v1379 = vsel %vm66, %v1374, 0
    %1381 = vmatprep.subr.bf16.mxu0 0
    %1382 = vmatpush1.bf16.msra.mxu0 %v1376
    %1383 = vmatprep.subr.bf16.mxu0 0
    %1384 = vmatpush1.bf16.msra.mxu0 0
    %1385 = vmatprep.subr.bf16.mxu0 0
    %1386 = vmatpush1.bf16.msra.mxu0 0
    %1387 = vmatprep.subr.bf16.mxu0 0
    %1388 = vmatpush1.bf16.msra.mxu0 0
    %1389 = vmatprep.subr.bf16.mxu0 0
    %1390 = vmatpush1.bf16.msra.mxu0 0
    %1391 = vmatprep.subr.bf16.mxu0 0
    %1392 = vmatpush1.bf16.msra.mxu0 0
    %1393 = vmatprep.subr.bf16.mxu0 0
    %1394 = vmatpush1.bf16.msra.mxu0 0
    %1395 = vmatprep.subr.bf16.mxu0 0
    %1396 = vmatpush1.bf16.msra.mxu0 0
    %1397 = vmatprep.subr.bf16.mxu0 0
    %1398 = vmatpush1.bf16.msra.mxu0 0
    %1399 = vmatprep.subr.bf16.mxu0 0
    %1400 = vmatpush1.bf16.msra.mxu0 0
    %1401 = vmatprep.subr.bf16.mxu0 0
    %1402 = vmatpush1.bf16.msra.mxu0 0
    %1403 = vmatprep.subr.bf16.mxu0 0
    %1404 = vmatpush1.bf16.msra.mxu0 0
    %1405 = vmatprep.subr.bf16.mxu0 0
    %1406 = vmatpush1.bf16.msra.mxu0 0
    %1407 = vmatprep.subr.bf16.mxu0 0
    %1408 = vmatpush1.bf16.msra.mxu0 0
    %1409 = vmatprep.subr.bf16.mxu0 0
    %1410 = vmatpush1.bf16.msra.mxu0 0
    %1411 = vmatprep.subr.bf16.mxu0 0
    %1412 = vmatpush1.bf16.msra.mxu0 0
    %1413 = vmatprep.mubr.bf16.mxu0 0
    %1414 = vmatmul.mubr.bf16.gmra.mrb[0].mxu0 %v1379
    %v1415 = vpop.f32.mrb[0].mxu0
    %v1416 = vadd.f32 0.0, %v1415
    %v1417 = vpop.f32.mrb[0].mxu0
    %v1418 = vpop.f32.mrb[0].mxu0
    %v1419 = vadd.f32 0.0, %v1418
    %v1420 = vpop.f32.mrb[0].mxu0
    %1421 = vdwg.mxu0
    %v1422 = vld [vmem:[#allocation2 + $0x60] sm:$0xf]
    %v1423 = vld [vmem:[#allocation2 + $0x64] sm:$0xf]
    %v1424 = vld [vmem:[#allocation2 + $0x68] sm:$0xf]
    %v1425 = vld [vmem:[#allocation2 + $0x6c] sm:$0xf]
    %v1426 = vld [vmem:[#allocation5 + $0x5] sm:$0x1]
    %v1427 = vld [vmem:[#allocation5 + $0x8] sm:$0x1]
    %v1428 = vld [vmem:[#allocation5 + $0xb] sm:$0x1]
    %v1429 = vadd.f32 %v1229, %v1416
    %v1430 = vadd.f32 %v1230, %v1419
    %v1431 = vpack.c.bf16 %v1430, %v1429
    %v1432 = vlaneseq
    %v1433 = vshrl.u32 %v1432, 7
    %v1434 = vsub.s32 0, %v1433
    %v1435 = vrot.slane %v1426, %v1434
    %v1440 = vunpack.c.l.b16 %v1422
    %v1441 = vunpack.c.l.b16 %v1423
    %v1442 = vunpack.c.l.b16 %v1424
    %v1443 = vunpack.c.l.b16 %v1425
    %v1444 = vpack.c.b16 %v1441, %v1440
    %v1445 = vpack.c.b16 %v1443, %v1442
    %v1449 = vsel %vm226, %v1431, 0
    %1451 = vmatprep.subr.bf16.mxu0 0
    %1452 = vmatpush1.bf16.msra.mxu0 %v1444
    %1453 = vmatprep.subr.bf16.mxu0 0
    %1454 = vmatpush1.bf16.msra.mxu0 %v1445
    %1455 = vmatprep.subr.bf16.mxu0 0
    %1456 = vmatpush1.bf16.msra.mxu0 0
    %1457 = vmatprep.subr.bf16.mxu0 0
    %1458 = vmatpush1.bf16.msra.mxu0 0
    %1459 = vmatprep.subr.bf16.mxu0 0
    %1460 = vmatpush1.bf16.msra.mxu0 0
    %1461 = vmatprep.subr.bf16.mxu0 0
    %1462 = vmatpush1.bf16.msra.mxu0 0
    %1463 = vmatprep.subr.bf16.mxu0 0
    %1464 = vmatpush1.bf16.msra.mxu0 0
    %1465 = vmatprep.subr.bf16.mxu0 0
    %1466 = vmatpush1.bf16.msra.mxu0 0
    %1467 = vmatprep.subr.bf16.mxu0 0
    %1468 = vmatpush1.bf16.msra.mxu0 0
    %1469 = vmatprep.subr.bf16.mxu0 0
    %1470 = vmatpush1.bf16.msra.mxu0 0
    %1471 = vmatprep.subr.bf16.mxu0 0
    %1472 = vmatpush1.bf16.msra.mxu0 0
    %1473 = vmatprep.subr.bf16.mxu0 0
    %1474 = vmatpush1.bf16.msra.mxu0 0
    %1475 = vmatprep.subr.bf16.mxu0 0
    %1476 = vmatpush1.bf16.msra.mxu0 0
    %1477 = vmatprep.subr.bf16.mxu0 0
    %1478 = vmatpush1.bf16.msra.mxu0 0
    %1479 = vmatprep.subr.bf16.mxu0 0
    %1480 = vmatpush1.bf16.msra.mxu0 0
    %1481 = vmatprep.subr.bf16.mxu0 0
    %1482 = vmatpush1.bf16.msra.mxu0 0
    %1483 = vmatprep.mubr.bf16.mxu0 0
    %1484 = vmatmul.mubr.bf16.gmra.mrb[0].mxu0 %v1449
    %v1485 = vpop.f32.mrb[0].mxu0
    %v1486 = vadd.f32 %v1435, %v1485
    %v1487 = vpop.f32.mrb[0].mxu0
    %v1488 = vpop.f32.mrb[0].mxu0
    %v1489 = vadd.f32 %v1435, %v1488
    %v1490 = vpop.f32.mrb[0].mxu0
    %1491 = vdwg.mxu0
    %v1492 = vsel %vm226, %v1486, 0.0
    %1493 = vadd.xlane.f32.xlu0 %v1492
    %v1494 = vpop.xlane.xlu0 %1493
    %v1495 = vsel %vm226, %v1489, 0.0
    %1496 = vadd.xlane.f32.xlu0 %v1495
    %v1497 = vpop.xlane.xlu0 %1496
    %v1498 = vmul.f32 %v1494, %v1198
    %v1499 = vmul.f32 %v1497, %v1198
    %v1500 = vsub.f32 %v1486, %v1498
    %v1501 = vsub.f32 %v1489, %v1499
    %v1502 = vmul.f32 %v1500, %v1500
    %v1503 = vmul.f32 %v1501, %v1501
    %v1504 = vsel %vm226, %v1502, 0.0
    %1505 = vadd.xlane.f32.xlu0 %v1504
    %v1506 = vpop.xlane.xlu0 %1505
    %v1507 = vsel %vm226, %v1503, 0.0
    %1508 = vadd.xlane.f32.xlu0 %v1507
    %v1509 = vpop.xlane.xlu0 %1508
    %v1510 = vmul.f32 %v1506, %v1198
    %v1511 = vmul.f32 %v1509, %v1198
    %v1512 = vadd.f32 %v1510, 1e-05
    %v1513 = vadd.f32 %v1511, 1e-05
    %v1514 = vrsqrt.pop %v1512
    %v1515 = vrsqrt.pop %v1513
    %v1516 = vmul.f32 %v1500, %v1514
    %v1517 = vmul.f32 %v1501, %v1515
    %v1518 = vlaneseq
    %v1519 = vshrl.u32 %v1518, 7
    %v1520 = vsub.s32 0, %v1519
    %v1521 = vrot.slane %v1427, %v1520
    %v1522 = vmul.f32 %v1516, %v1521
    %v1523 = vmul.f32 %v1517, %v1521
    %v1524 = vlaneseq
    %v1525 = vshrl.u32 %v1524, 7
    %v1526 = vsub.s32 0, %v1525
    %v1527 = vrot.slane %v1428, %v1526
    %v1528 = vadd.f32 %v1522, %v1527
    %v1529 = vadd.f32 %v1523, %v1527
    %v1530 = vld [vmem:[#allocation2 + $0x40] sm:$0xf]
    %v1531 = vld [vmem:[#allocation2 + $0x44] sm:$0xf]
    %v1532 = vld [vmem:[#allocation2 + $0x48] sm:$0xf]
    %v1533 = vld [vmem:[#allocation2 + $0x4c] sm:$0xf]
    %v1534 = vld [vmem:[#allocation5 + $0x3] sm:$0x1]
    %v1535 = vpack.c.bf16 %v1529, %v1528
    %v1536 = vlaneseq
    %v1537 = vshrl.u32 %v1536, 7
    %v1538 = vsub.s32 0, %v1537
    %v1539 = vrot.slane %v1534, %v1538
    %v1544 = vunpack.c.l.b16 %v1530
    %v1545 = vunpack.c.l.b16 %v1531
    %v1546 = vunpack.c.l.b16 %v1532
    %v1547 = vunpack.c.l.b16 %v1533
    %v1548 = vpack.c.b16 %v1545, %v1544
    %v1549 = vpack.c.b16 %v1547, %v1546
    %v1553 = vsel %vm226, %v1535, 0
    %1555 = vmatprep.subr.bf16.mxu0 0
    %1556 = vmatpush1.bf16.msra.mxu0 %v1548
    %1557 = vmatprep.subr.bf16.mxu0 0
    %1558 = vmatpush1.bf16.msra.mxu0 %v1549
    %1559 = vmatprep.subr.bf16.mxu0 0
    %1560 = vmatpush1.bf16.msra.mxu0 0
    %1561 = vmatprep.subr.bf16.mxu0 0
    %1562 = vmatpush1.bf16.msra.mxu0 0
    %1563 = vmatprep.subr.bf16.mxu0 0
    %1564 = vmatpush1.bf16.msra.mxu0 0
    %1565 = vmatprep.subr.bf16.mxu0 0
    %1566 = vmatpush1.bf16.msra.mxu0 0
    %1567 = vmatprep.subr.bf16.mxu0 0
    %1568 = vmatpush1.bf16.msra.mxu0 0
    %1569 = vmatprep.subr.bf16.mxu0 0
    %1570 = vmatpush1.bf16.msra.mxu0 0
    %1571 = vmatprep.subr.bf16.mxu0 0
    %1572 = vmatpush1.bf16.msra.mxu0 0
    %1573 = vmatprep.subr.bf16.mxu0 0
    %1574 = vmatpush1.bf16.msra.mxu0 0
    %1575 = vmatprep.subr.bf16.mxu0 0
    %1576 = vmatpush1.bf16.msra.mxu0 0
    %1577 = vmatprep.subr.bf16.mxu0 0
    %1578 = vmatpush1.bf16.msra.mxu0 0
    %1579 = vmatprep.subr.bf16.mxu0 0
    %1580 = vmatpush1.bf16.msra.mxu0 0
    %1581 = vmatprep.subr.bf16.mxu0 0
    %1582 = vmatpush1.bf16.msra.mxu0 0
    %1583 = vmatprep.subr.bf16.mxu0 0
    %1584 = vmatpush1.bf16.msra.mxu0 0
    %1585 = vmatprep.subr.bf16.mxu0 0
    %1586 = vmatpush1.bf16.msra.mxu0 0
    %1587 = vmatprep.mubr.bf16.mxu0 0
    %1588 = vmatmul.mubr.bf16.gmra.mrb[0].mxu0 %v1553
    %v1589 = vpop.f32.mrb[0].mxu0
    %v1590 = vadd.f32 %v1539, %v1589
    %v1591 = vpop.f32.mrb[0].mxu0
    %v1592 = vpop.f32.mrb[0].mxu0
    %v1593 = vadd.f32 %v1539, %v1592
    %v1594 = vpop.f32.mrb[0].mxu0
    %1595 = vdwg.mxu0
    %v1596 = vpack.c.bf16 %v1593, %v1590
    %1598 = vrot.lane.b32.xlu0 %v1596, 96
    %v1599 = vpop.permute.xlu0 %1598
    %v1601 = vsel %vm226, %v1596, 0
    %v1604 = vsel %vm226, %v1599, 0
    %1606 = vmatprep.subr.bf16.mxu0 0
    %1607 = vmatpush1.bf16.xpose.msra.mxu0 %v1604
    %1608 = vmatprep.subr.bf16.mxu0 0
    %1609 = vmatpush1.bf16.xpose.msra.mxu0 0
    %1610 = vmatprep.subr.bf16.mxu0 0
    %1611 = vmatpush1.bf16.xpose.msra.mxu0 0
    %1612 = vmatprep.subr.bf16.mxu0 0
    %1613 = vmatpush1.bf16.xpose.msra.mxu0 0
    %1614 = vmatprep.subr.bf16.mxu0 0
    %1615 = vmatpush1.bf16.xpose.msra.mxu0 0
    %1616 = vmatprep.subr.bf16.mxu0 0
    %1617 = vmatpush1.bf16.xpose.msra.mxu0 0
    %1618 = vmatprep.subr.bf16.mxu0 0
    %1619 = vmatpush1.bf16.xpose.msra.mxu0 0
    %1620 = vmatprep.subr.bf16.mxu0 0
    %1621 = vmatpush1.bf16.xpose.msra.mxu0 0
    %1622 = vmatprep.subr.bf16.mxu0 0
    %1623 = vmatpush1.bf16.xpose.msra.mxu0 0
    %1624 = vmatprep.subr.bf16.mxu0 0
    %1625 = vmatpush1.bf16.xpose.msra.mxu0 0
    %1626 = vmatprep.subr.bf16.mxu0 0
    %1627 = vmatpush1.bf16.xpose.msra.mxu0 0
    %1628 = vmatprep.subr.bf16.mxu0 0
    %1629 = vmatpush1.bf16.xpose.msra.mxu0 0
    %1630 = vmatprep.subr.bf16.mxu0 0
    %1631 = vmatpush1.bf16.xpose.msra.mxu0 0
    %1632 = vmatprep.subr.bf16.mxu0 0
    %1633 = vmatpush1.bf16.xpose.msra.mxu0 0
    %1634 = vmatprep.subr.bf16.mxu0 0
    %1635 = vmatpush1.bf16.xpose.msra.mxu0 0
    %1636 = vmatprep.subr.bf16.mxu0 0
    %1637 = vmatpush1.bf16.xpose.msra.mxu0 0
    %1638 = vmatprep.mubr.bf16.mxu0 0
    %1639 = vmatmul.mubr.bf16.gmra.mrb[0].mxu0 %v1601
    %v1640 = vpop.f32.mrb[0].mxu0
    %v1641 = vadd.f32 0.0, %v1640
    %v1642 = vpop.f32.mrb[0].mxu0
    %v1643 = vpop.f32.mrb[0].mxu0
    %v1644 = vadd.f32 0.0, %v1643
    %v1645 = vpop.f32.mrb[0].mxu0
    %1646 = vdwg.mxu0
    %v1647 = vmul.f32 %v1641, 0.17677669
    %v1648 = vmul.f32 %v1644, 0.17677669
    %v1649 = vadd.f32 %v1647, %v198
    %v1650 = vadd.f32 %v1648, %v199
    %v1651 = vsel %vm66, %v1649, -inf
    %1652 = vmax.xlane.f32.xlu0 %v1651
    %v1653 = vpop.xlane.xlu0 %1652
    %v1654 = vsel %vm66, %v1650, -inf
    %1655 = vmax.xlane.f32.xlu0 %v1654
    %v1656 = vpop.xlane.xlu0 %1655
    %v1657 = vsub.f32 %v1649, %v1653
    %v1658 = vsub.f32 %v1650, %v1656
    %v1659 = vmul.f32 %v1657, 1.442695
    %v1660 = vpow.pop %v1659
    %v1661 = vmul.f32 %v1658, 1.442695
    %v1662 = vpow.pop %v1661
    %v1663 = vsel %vm66, %v1660, 0.0
    %1664 = vadd.xlane.f32.xlu0 %v1663
    %v1665 = vpop.xlane.xlu0 %1664
    %v1666 = vsel %vm66, %v1662, 0.0
    %1667 = vadd.xlane.f32.xlu0 %v1666
    %v1668 = vpop.xlane.xlu0 %1667
    %v1669 = vrcp.pop %v1665
    %v1670 = vrcp.pop %v1668
    %v1671 = vmul.f32 %v1660, %v1669
    %v1672 = vmul.f32 %v1662, %v1670
    %v1673 = vpack.c.bf16 %v1672, %v1671
    %1674 = vrot.lane.b32.xlu0 %v1596, 64
    %v1675 = vpop.permute.xlu0 %1674
    %v1678 = vsel %vm66, %v1673, 0
    %1680 = vmatprep.subr.bf16.mxu0 0
    %1681 = vmatpush1.bf16.msra.mxu0 %v1675
    %1682 = vmatprep.subr.bf16.mxu0 0
    %1683 = vmatpush1.bf16.msra.mxu0 0
    %1684 = vmatprep.subr.bf16.mxu0 0
    %1685 = vmatpush1.bf16.msra.mxu0 0
    %1686 = vmatprep.subr.bf16.mxu0 0
    %1687 = vmatpush1.bf16.msra.mxu0 0
    %1688 = vmatprep.subr.bf16.mxu0 0
    %1689 = vmatpush1.bf16.msra.mxu0 0
    %1690 = vmatprep.subr.bf16.mxu0 0
    %1691 = vmatpush1.bf16.msra.mxu0 0
    %1692 = vmatprep.subr.bf16.mxu0 0
    %1693 = vmatpush1.bf16.msra.mxu0 0
    %1694 = vmatprep.subr.bf16.mxu0 0
    %1695 = vmatpush1.bf16.msra.mxu0 0
    %1696 = vmatprep.subr.bf16.mxu0 0
    %1697 = vmatpush1.bf16.msra.mxu0 0
    %1698 = vmatprep.subr.bf16.mxu0 0
    %1699 = vmatpush1.bf16.msra.mxu0 0
    %1700 = vmatprep.subr.bf16.mxu0 0
    %1701 = vmatpush1.bf16.msra.mxu0 0
    %1702 = vmatprep.subr.bf16.mxu0 0
    %1703 = vmatpush1.bf16.msra.mxu0 0
    %1704 = vmatprep.subr.bf16.mxu0 0
    %1705 = vmatpush1.bf16.msra.mxu0 0
    %1706 = vmatprep.subr.bf16.mxu0 0
    %1707 = vmatpush1.bf16.msra.mxu0 0
    %1708 = vmatprep.subr.bf16.mxu0 0
    %1709 = vmatpush1.bf16.msra.mxu0 0
    %1710 = vmatprep.subr.bf16.mxu0 0
    %1711 = vmatpush1.bf16.msra.mxu0 0
    %1712 = vmatprep.mubr.bf16.mxu0 0
    %1713 = vmatmul.mubr.bf16.gmra.mrb[0].mxu0 %v1678
    %v1714 = vpop.f32.mrb[0].mxu0
    %v1715 = vadd.f32 0.0, %v1714
    %v1716 = vpop.f32.mrb[0].mxu0
    %v1717 = vpop.f32.mrb[0].mxu0
    %v1718 = vadd.f32 0.0, %v1717
    %v1719 = vpop.f32.mrb[0].mxu0
    %1720 = vdwg.mxu0
    %v1721 = vld [vmem:[#allocation2 + $0x70] sm:$0xf]
    %v1722 = vld [vmem:[#allocation2 + $0x74] sm:$0xf]
    %v1723 = vld [vmem:[#allocation2 + $0x78] sm:$0xf]
    %v1724 = vld [vmem:[#allocation2 + $0x7c] sm:$0xf]
    %v1725 = vld [vmem:[#allocation5 + $0x6] sm:$0x1]
    %v1726 = vld [vmem:[#allocation5 + $0x9] sm:$0x1]
    %v1727 = vld [vmem:[#allocation5 + $0xc] sm:$0x1]
    %v1728 = vadd.f32 %v1528, %v1715
    %v1729 = vadd.f32 %v1529, %v1718
    %v1730 = vpack.c.bf16 %v1729, %v1728
    %v1731 = vlaneseq
    %v1732 = vshrl.u32 %v1731, 7
    %v1733 = vsub.s32 0, %v1732
    %v1734 = vrot.slane %v1725, %v1733
    %v1739 = vunpack.c.l.b16 %v1721
    %v1740 = vunpack.c.l.b16 %v1722
    %v1741 = vunpack.c.l.b16 %v1723
    %v1742 = vunpack.c.l.b16 %v1724
    %v1743 = vpack.c.b16 %v1740, %v1739
    %v1744 = vpack.c.b16 %v1742, %v1741
    %v1748 = vsel %vm226, %v1730, 0
    %1750 = vmatprep.subr.bf16.mxu0 0
    %1751 = vmatpush1.bf16.msra.mxu0 %v1743
    %1752 = vmatprep.subr.bf16.mxu0 0
    %1753 = vmatpush1.bf16.msra.mxu0 %v1744
    %1754 = vmatprep.subr.bf16.mxu0 0
    %1755 = vmatpush1.bf16.msra.mxu0 0
    %1756 = vmatprep.subr.bf16.mxu0 0
    %1757 = vmatpush1.bf16.msra.mxu0 0
    %1758 = vmatprep.subr.bf16.mxu0 0
    %1759 = vmatpush1.bf16.msra.mxu0 0
    %1760 = vmatprep.subr.bf16.mxu0 0
    %1761 = vmatpush1.bf16.msra.mxu0 0
    %1762 = vmatprep.subr.bf16.mxu0 0
    %1763 = vmatpush1.bf16.msra.mxu0 0
    %1764 = vmatprep.subr.bf16.mxu0 0
    %1765 = vmatpush1.bf16.msra.mxu0 0
    %1766 = vmatprep.subr.bf16.mxu0 0
    %1767 = vmatpush1.bf16.msra.mxu0 0
    %1768 = vmatprep.subr.bf16.mxu0 0
    %1769 = vmatpush1.bf16.msra.mxu0 0
    %1770 = vmatprep.subr.bf16.mxu0 0
    %1771 = vmatpush1.bf16.msra.mxu0 0
    %1772 = vmatprep.subr.bf16.mxu0 0
    %1773 = vmatpush1.bf16.msra.mxu0 0
    %1774 = vmatprep.subr.bf16.mxu0 0
    %1775 = vmatpush1.bf16.msra.mxu0 0
    %1776 = vmatprep.subr.bf16.mxu0 0
    %1777 = vmatpush1.bf16.msra.mxu0 0
    %1778 = vmatprep.subr.bf16.mxu0 0
    %1779 = vmatpush1.bf16.msra.mxu0 0
    %1780 = vmatprep.subr.bf16.mxu0 0
    %1781 = vmatpush1.bf16.msra.mxu0 0
    %1782 = vmatprep.mubr.bf16.mxu0 0
    %1783 = vmatmul.mubr.bf16.gmra.mrb[0].mxu0 %v1748
    %v1784 = vpop.f32.mrb[0].mxu0
    %v1785 = vadd.f32 %v1734, %v1784
    %v1786 = vpop.f32.mrb[0].mxu0
    %v1787 = vpop.f32.mrb[0].mxu0
    %v1788 = vadd.f32 %v1734, %v1787
    %v1789 = vpop.f32.mrb[0].mxu0
    %1790 = vdwg.mxu0
    %v1791 = vsel %vm226, %v1785, 0.0
    %1792 = vadd.xlane.f32.xlu0 %v1791
    %v1793 = vpop.xlane.xlu0 %1792
    %v1794 = vsel %vm226, %v1788, 0.0
    %1795 = vadd.xlane.f32.xlu0 %v1794
    %v1796 = vpop.xlane.xlu0 %1795
    %v1797 = vmul.f32 %v1793, %v1198
    %v1798 = vmul.f32 %v1796, %v1198
    %v1799 = vsub.f32 %v1785, %v1797
    %v1800 = vsub.f32 %v1788, %v1798
    %v1801 = vmul.f32 %v1799, %v1799
    %v1802 = vmul.f32 %v1800, %v1800
    %v1803 = vsel %vm226, %v1801, 0.0
    %1804 = vadd.xlane.f32.xlu0 %v1803
    %v1805 = vpop.xlane.xlu0 %1804
    %v1806 = vsel %vm226, %v1802, 0.0
    %1807 = vadd.xlane.f32.xlu0 %v1806
    %v1808 = vpop.xlane.xlu0 %1807
    %v1809 = vmul.f32 %v1805, %v1198
    %v1810 = vmul.f32 %v1808, %v1198
    %v1811 = vadd.f32 %v1809, 1e-05
    %v1812 = vadd.f32 %v1810, 1e-05
    %v1813 = vrsqrt.pop %v1811
    %v1814 = vrsqrt.pop %v1812
    %v1815 = vmul.f32 %v1799, %v1813
    %v1816 = vmul.f32 %v1800, %v1814
    %v1817 = vlaneseq
    %v1818 = vshrl.u32 %v1817, 7
    %v1819 = vsub.s32 0, %v1818
    %v1820 = vrot.slane %v1726, %v1819
    %v1821 = vmul.f32 %v1815, %v1820
    %v1822 = vmul.f32 %v1816, %v1820
    %v1823 = vlaneseq
    %v1824 = vshrl.u32 %v1823, 7
    %v1825 = vsub.s32 0, %v1824
    %v1826 = vrot.slane %v1727, %v1825
    %v1827 = vadd.f32 %v1821, %v1826
    %v1828 = vadd.f32 %v1822, %v1826
    %v1831 = vcombine.high %v1827, %v1827
    %v1833 = vunpack.c.l.s4 1983009808
    %v1834 = vunpack.c.0.s8 %v1833
    %v1835 = vlaneseq
    %v1836 = vshrl.u32 %v1835, 7
    %v1837 = vsub.s32 %v1834, %v1836
    %v1838 = vrot.slane %v1827, %v1837
    %v1840 = vunpack.c.l.s4 1983009808
    %v1841 = vunpack.c.0.s8 %v1840
    %v1842 = vlaneseq
    %v1843 = vshrl.u32 %v1842, 7
    %v1844 = vsub.s32 %v1841, %v1843
    %v1845 = vrot.slane %v1831, %v1844
    %v1846 = vcombine.high %v1838, %v1838
    %v1847 = vcombine.high %v1845, %v1845
    %v1848 = vcombine.high %v1828, %v1828
    %v1850 = vunpack.c.l.s4 1983009808
    %v1851 = vunpack.c.0.s8 %v1850
    %v1852 = vlaneseq
    %v1853 = vshrl.u32 %v1852, 7
    %v1854 = vsub.s32 %v1851, %v1853
    %v1855 = vrot.slane %v1828, %v1854
    %v1857 = vunpack.c.l.s4 1983009808
    %v1858 = vunpack.c.0.s8 %v1857
    %v1859 = vlaneseq
    %v1860 = vshrl.u32 %v1859, 7
    %v1861 = vsub.s32 %v1858, %v1860
    %v1862 = vrot.slane %v1848, %v1861
    %v1863 = vcombine.high %v1855, %v1855
    %v1864 = vcombine.high %v1862, %v1862
    %vm1873 = vcmask 254976
    %v1874 = vsel %vm1873, %v1838, 0.0
    %v1875 = vsel %vm1873, %v1846, 0.0
    %v1876 = vadd.f32 %v1874, %v1875
    %v1877 = vsel %vm1873, %v1845, 0.0
    %v1878 = vadd.f32 %v1876, %v1877
    %v1879 = vsel %vm1873, %v1847, 0.0
    %v1880 = vadd.f32 %v1878, %v1879
    %v1881 = vsel %vm1873, %v1855, 0.0
    %v1882 = vadd.f32 %v1880, %v1881
    %v1883 = vsel %vm1873, %v1863, 0.0
    %v1884 = vadd.f32 %v1882, %v1883
    %v1885 = vsel %vm1873, %v1862, 0.0
    %v1886 = vadd.f32 %v1884, %v1885
    %v1887 = vsel %vm1873, %v1864, 0.0
    %v1888 = vadd.f32 %v1886, %v1887
    %v1889 = vrcp.pop 8.0
    %v1890 = vmul.f32 %v1888, %v1889
    %v1891 = vld [vmem:[#allocation5 + $0x20] sm:$0xff]
    %v1892 = vld [vmem:[#allocation5 + $0x28] sm:$0xff]
    %v1893 = vld [vmem:[#allocation5 + $0x30] sm:$0xff]
    %v1894 = vld [vmem:[#allocation5 + $0x38] sm:$0xff]
    %v1895 = vld [vmem:[#allocation5 + $0xd] sm:$0x1]
    %v1896 = vld [vmem:[#allocation5 + $0x40] sm:$0xff]
    %v1897 = vld [vmem:[#allocation5 + $0x48] sm:$0xff]
    %v1898 = vld [vmem:[#allocation5 + $0x50] sm:$0xff]
    %v1899 = vld [vmem:[#allocation5 + $0x58] sm:$0xff]
    %v1900 = vld [vmem:[#allocation5 + $0xe] sm:$0x1]
    %v1901 = vlaneseq
    %v1902 = vshrl.u32 %v1901, 7
    %v1903 = vsub.s32 0, %v1902
    %v1904 = vrot.slane %v1895, %v1903
    %v1906 = vsel %vm226, %v1890, 0
    %1908 = vmatprep.subr.mxu0 0.0
    %1909 = vmatpush1.msra.mxu0 %v1891
    %1910 = vmatprep.subr.mxu0 0.0
    %1911 = vmatpush1.msra.mxu0 %v1892
    %1912 = vmatprep.subr.mxu0 0.0
    %1913 = vmatpush1.msra.mxu0 %v1893
    %1914 = vmatprep.subr.mxu0 0.0
    %1915 = vmatpush1.msra.mxu0 %v1894
    %1916 = vmatprep.subr.mxu0 0.0
    %1917 = vmatpush1.msra.mxu0 0.0
    %1918 = vmatprep.subr.mxu0 0.0
    %1919 = vmatpush1.msra.mxu0 0.0
    %1920 = vmatprep.subr.mxu0 0.0
    %1921 = vmatpush1.msra.mxu0 0.0
    %1922 = vmatprep.subr.mxu0 0.0
    %1923 = vmatpush1.msra.mxu0 0.0
    %1924 = vmatprep.subr.mxu0 0.0
    %1925 = vmatpush1.msra.mxu0 0.0
    %1926 = vmatprep.subr.mxu0 0.0
    %1927 = vmatpush1.msra.mxu0 0.0
    %1928 = vmatprep.subr.mxu0 0.0
    %1929 = vmatpush1.msra.mxu0 0.0
    %1930 = vmatprep.subr.mxu0 0.0
    %1931 = vmatpush1.msra.mxu0 0.0
    %1932 = vmatprep.subr.mxu0 0.0
    %1933 = vmatpush1.msra.mxu0 0.0
    %1934 = vmatprep.subr.mxu0 0.0
    %1935 = vmatpush1.msra.mxu0 0.0
    %1936 = vmatprep.subr.mxu0 0.0
    %1937 = vmatpush1.msra.mxu0 0.0
    %1938 = vmatprep.subr.mxu0 0.0
    %1939 = vmatpush1.msra.mxu0 0.0
    %1940 = vmatprep.subr.mxu0 0.0
    %1941 = vmatpush1.msra.mxu0 0.0
    %1942 = vmatprep.subr.mxu0 0.0
    %1943 = vmatpush1.msra.mxu0 0.0
    %1944 = vmatprep.subr.mxu0 0.0
    %1945 = vmatpush1.msra.mxu0 0.0
    %1946 = vmatprep.subr.mxu0 0.0
    %1947 = vmatpush1.msra.mxu0 0.0
    %1948 = vmatprep.subr.mxu0 0.0
    %1949 = vmatpush1.msra.mxu0 0.0
    %1950 = vmatprep.subr.mxu0 0.0
    %1951 = vmatpush1.msra.mxu0 0.0
    %1952 = vmatprep.subr.mxu0 0.0
    %1953 = vmatpush1.msra.mxu0 0.0
    %1954 = vmatprep.subr.mxu0 0.0
    %1955 = vmatpush1.msra.mxu0 0.0
    %1956 = vmatprep.subr.mxu0 0.0
    %1957 = vmatpush1.msra.mxu0 0.0
    %1958 = vmatprep.subr.mxu0 0.0
    %1959 = vmatpush1.msra.mxu0 0.0
    %1960 = vmatprep.subr.mxu0 0.0
    %1961 = vmatpush1.msra.mxu0 0.0
    %1962 = vmatprep.subr.mxu0 0.0
    %1963 = vmatpush1.msra.mxu0 0.0
    %1964 = vmatprep.subr.mxu0 0.0
    %1965 = vmatpush1.msra.mxu0 0.0
    %1966 = vmatprep.subr.mxu0 0.0
    %1967 = vmatpush1.msra.mxu0 0.0
    %1968 = vmatprep.subr.mxu0 0.0
    %1969 = vmatpush1.msra.mxu0 0.0
    %1970 = vmatprep.subr.mxu0 0.0
    %1971 = vmatpush1.msra.mxu0 0.0
    %1972 = vmatprep.mubr.f32.mxu0 0.0
    %1973 = vmatmul.mubr.f32.gmra.mrb[0].mxu0 %v1906
    %v1974 = vpop.f32.mrb[0].mxu0
    %v1975 = vadd.f32 %v1904, %v1974
    %v1976 = vpop.f32.mrb[0].mxu0
    %1977 = vdwg.mxu0
    %v1978 = vmax.f32 %v1975, 0.0
    %v1979 = vlaneseq
    %v1980 = vshrl.u32 %v1979, 7
    %v1981 = vsub.s32 0, %v1980
    %v1982 = vrot.slane %v1900, %v1981
    %v1984 = vsel %vm226, %v1978, 0
    %1986 = vmatprep.subr.mxu0 0.0
    %1987 = vmatpush1.msra.mxu0 %v1896
    %1988 = vmatprep.subr.mxu0 0.0
    %1989 = vmatpush1.msra.mxu0 %v1897
    %1990 = vmatprep.subr.mxu0 0.0
    %1991 = vmatpush1.msra.mxu0 %v1898
    %1992 = vmatprep.subr.mxu0 0.0
    %1993 = vmatpush1.msra.mxu0 %v1899
    %1994 = vmatprep.subr.mxu0 0.0
    %1995 = vmatpush1.msra.mxu0 0.0
    %1996 = vmatprep.subr.mxu0 0.0
    %1997 = vmatpush1.msra.mxu0 0.0
    %1998 = vmatprep.subr.mxu0 0.0
    %1999 = vmatpush1.msra.mxu0 0.0
    %2000 = vmatprep.subr.mxu0 0.0
    %2001 = vmatpush1.msra.mxu0 0.0
    %2002 = vmatprep.subr.mxu0 0.0
    %2003 = vmatpush1.msra.mxu0 0.0
    %2004 = vmatprep.subr.mxu0 0.0
    %2005 = vmatpush1.msra.mxu0 0.0
    %2006 = vmatprep.subr.mxu0 0.0
    %2007 = vmatpush1.msra.mxu0 0.0
    %2008 = vmatprep.subr.mxu0 0.0
    %2009 = vmatpush1.msra.mxu0 0.0
    %2010 = vmatprep.subr.mxu0 0.0
    %2011 = vmatpush1.msra.mxu0 0.0
    %2012 = vmatprep.subr.mxu0 0.0
    %2013 = vmatpush1.msra.mxu0 0.0
    %2014 = vmatprep.subr.mxu0 0.0
    %2015 = vmatpush1.msra.mxu0 0.0
    %2016 = vmatprep.subr.mxu0 0.0
    %2017 = vmatpush1.msra.mxu0 0.0
    %2018 = vmatprep.subr.mxu0 0.0
    %2019 = vmatpush1.msra.mxu0 0.0
    %2020 = vmatprep.subr.mxu0 0.0
    %2021 = vmatpush1.msra.mxu0 0.0
    %2022 = vmatprep.subr.mxu0 0.0
    %2023 = vmatpush1.msra.mxu0 0.0
    %2024 = vmatprep.subr.mxu0 0.0
    %2025 = vmatpush1.msra.mxu0 0.0
    %2026 = vmatprep.subr.mxu0 0.0
    %2027 = vmatpush1.msra.mxu0 0.0
    %2028 = vmatprep.subr.mxu0 0.0
    %2029 = vmatpush1.msra.mxu0 0.0
    %2030 = vmatprep.subr.mxu0 0.0
    %2031 = vmatpush1.msra.mxu0 0.0
    %2032 = vmatprep.subr.mxu0 0.0
    %2033 = vmatpush1.msra.mxu0 0.0
    %2034 = vmatprep.subr.mxu0 0.0
    %2035 = vmatpush1.msra.mxu0 0.0
    %2036 = vmatprep.subr.mxu0 0.0
    %2037 = vmatpush1.msra.mxu0 0.0
    %2038 = vmatprep.subr.mxu0 0.0
    %2039 = vmatpush1.msra.mxu0 0.0
    %2040 = vmatprep.subr.mxu0 0.0
    %2041 = vmatpush1.msra.mxu0 0.0
    %2042 = vmatprep.subr.mxu0 0.0
    %2043 = vmatpush1.msra.mxu0 0.0
    %2044 = vmatprep.subr.mxu0 0.0
    %2045 = vmatpush1.msra.mxu0 0.0
    %2046 = vmatprep.subr.mxu0 0.0
    %2047 = vmatpush1.msra.mxu0 0.0
    %2048 = vmatprep.subr.mxu0 0.0
    %2049 = vmatpush1.msra.mxu0 0.0
    %2050 = vmatprep.mubr.f32.mxu0 0.0
    %2051 = vmatmul.mubr.f32.gmra.mrb[0].mxu0 %v1984
    %v2052 = vpop.f32.mrb[0].mxu0
    %v2053 = vadd.f32 %v1982, %v2052
    %v2054 = vpop.f32.mrb[0].mxu0
    %2055 = vdwg.mxu0
    %vm2056 = vcmask 9216
    %2057 = vst.msk [vmem:[#allocation7] sm:$0x3] %vm2056, %v2053
    // Predicated region
    $region26: #{transformer_forward.1} parent=1 // pred_check
      _
    $region27: #{transformer_forward.1} parent=1 // pred_check_branch
      %2059 = sbr.rel (0) target = $region29
    $region28: #{transformer_forward.1} parent=1 // pred_region
      %s2061 = ssub.s32 32, 32
      %2062 = vsyncadd [#allocation4], %s2061
      %s2064 = sshll.u32 [#allocation7], 4
      %s2065 = int_to_ptr.vmem [resolvable:$true] %s2064
      %2067 = dma.vmem_to_hbm [thread:$0]  %s2065, 32, %s4, [#allocation4]
    $region29: #{transformer_forward.1} parent=1 // pred_fallthru
      _
    // Predicated region
    $region30: #{transformer_forward.1} parent=1 // pred_check
      _
    $region31: #{transformer_forward.1} parent=1 // pred_check_branch
      %2069 = sbr.rel (0) target = $region33
    $region32: #{transformer_forward.1} parent=1 // pred_region
      %2070 = dma.done [#allocation4], 32
    $region33: #{transformer_forward.1} parent=1 // pred_fallthru
      _
    %2071 = vsyncpa [#allocation3], 1
    %2072 = vsyncpa [#allocation6], 1
    %2073 = vsyncpa [#allocation4], 1

</llo_original>
